<compile_context>
chip_gen: v5e
topology: v5e:2x2
jax: 0.10.0
libtpu: 0.0.40
codegen_flags: <defaults>
</compile_context>

<pallas_src>
import math

import jax
import jax.numpy as jnp
from jax.experimental import pallas as pl
from jax.experimental.pallas import tpu as pltpu

_MXU_DTYPE = jnp.bfloat16   # MXU input dtype; accumulation stays float32.


def _leaky(x):
    # LeakyReLU(negative_slope=0.1), in f32.
    return jnp.maximum(x, 0.1 * x)


def _round_up(x, m):
    return ((x + m - 1) // m) * m


def _cdiv(a, b):
    return (a + b - 1) // b


def simple_pnp_kernel(x_ref,
                      w1_ref, b1_ref, w2_ref, b2_ref, w3_ref, b3_ref,
                      w1rt_ref, b1rt_ref,
                      w2r_ref, b2r_ref, w2t_ref, b2t_ref,
                      wout_ref, bout_ref,
                      o_ref,
                      featj_ref, acc_ref):
    j = pl.program_id(1)          # position within group, 0..8
    gt = pl.program_id(2)         # group tile
    last_j = pl.num_programs(1) - 1
    last_gt = pl.num_programs(2) - 1

    bt = featj_ref.shape[0]
    rows = x_ref.shape[0]         # Gk * bt
    gk = rows // bt

    # ---- pointwise conv chain on Gk*Bt rows (channels-last) ----------------
    # bf16 MXU inputs, f32 accumulation; bias/act in f32.
    x = x_ref[...].astype(_MXU_DTYPE)                                 # (gk*bt, nIn)
    h = jnp.dot(x, w1_ref[...], preferred_element_type=jnp.float32) + b1_ref[...]
    h = _leaky(h)
    h = jnp.dot(h.astype(_MXU_DTYPE), w2_ref[...],
                preferred_element_type=jnp.float32) + b2_ref[...]
    h = _leaky(h)
    h = jnp.dot(h.astype(_MXU_DTYPE), w3_ref[...],
                preferred_element_type=jnp.float32) + b3_ref[...]     # (gk*bt, 128) f32

    # ---- max over the Gk groups of this tile (aligned static slices) -------
    hmax = h[0:bt, :]
    for g_local in range(1, gk):
        hmax = jnp.maximum(hmax, h[g_local * bt:(g_local + 1) * bt, :])

    @pl.when(gt == 0)
    def _():
        featj_ref[...] = hmax

    @pl.when(gt > 0)
    def _():
        featj_ref[...] = jnp.maximum(featj_ref[...], hmax)

    # ---- once all groups for this j are reduced: fused fc1 accumulation ----
    @pl.when(gt == last_gt)
    def _():
        f = featj_ref[...].astype(_MXU_DTYPE)                         # (bt, 128)
        part = jnp.dot(f, w1rt_ref[...],
                       preferred_element_type=jnp.float32)            # (bt, 1024)

        @pl.when(j == 0)
        def _():
            acc_ref[...] = part + b1rt_ref[...]

        @pl.when(j > 0)
        def _():
            acc_ref[...] = acc_ref[...] + part

        # ---- epilogue: fc2 on both branches + fused final projection -------
        @pl.when(j == last_j)
        def _():
            y = _leaky(acc_ref[...])                                  # (bt, 1024)
            yr = _leaky(jnp.dot(y[:, 0:512].astype(_MXU_DTYPE), w2r_ref[...],
                                preferred_element_type=jnp.float32) + b2r_ref[...])
            yt = _leaky(jnp.dot(y[:, 512:1024].astype(_MXU_DTYPE), w2t_ref[...],
                                preferred_element_type=jnp.float32) + b2t_ref[...])
            yrt = jnp.concatenate([yr, yt], axis=-1).astype(_MXU_DTYPE)  # (bt, 512)
            out = (jnp.dot(yrt, wout_ref[...],
                           preferred_element_type=jnp.float32)
                   + bout_ref[...])                                   # (bt, 128)
            o_ref[...] = out.astype(o_ref.dtype)


def simple_pnp_forward(x_ncw, params, *, bt_max=128, gk_max=16,
                       min_batch_tiles=2, vmem_limit_bytes=32 * 1024 * 1024):
    """x_ncw: (B, nIn, N) float32, PyTorch Conv1d layout. Returns (B, 7)."""
    B, nIn, N = x_ncw.shape
    assert N % 9 == 0, "data_size must be a multiple of 9"
    nG = N // 9

    # ---- batch tiling (minimal padding; >=2 tiles when big enough so the
    #      'parallel' batch axis can populate both v7x TensorCores) ----------
    B8 = _round_up(B, 8)
    n_bt = _cdiv(B8, bt_max)
    if B8 >= 8 * min_batch_tiles:
        n_bt = max(n_bt, min_batch_tiles)
    Bt = _round_up(_cdiv(B8, n_bt), 8)
    B_pad = n_bt * Bt

    # ---- group tiling: pad nG up with duplicated groups (max-invariant) ----
    Gk = min(gk_max, nG)
    nG_pad = _round_up(nG, Gk)
    n_gt = nG_pad // Gk

    xp = x_ncw.astype(jnp.float32)
    if B_pad != B:
        xp = jnp.pad(xp, ((0, B_pad - B), (0, 0), (0, 0)))
    if nG_pad != nG:
        extra = nG_pad - nG          # extra < Gk <= nG, so real groups exist
        xp = jnp.concatenate([xp, xp[:, :, :extra * 9]], axis=2)

    # Blocked input layout:
    #   X[j, b_tile, g_local*Bt + b_local, c] = x[b_tile*Bt + b_local, c, g*9 + j]
    x5 = xp.reshape(n_bt, Bt, nIn, nG_pad, 9)        # [bt, bl, c, g, j]
    x5 = jnp.transpose(x5, (4, 0, 3, 1, 2))          # [j, bt, g, bl, c]
    X = x5.reshape(9, n_bt, nG_pad * Bt, nIn)

    p = params
    cdt = _MXU_DTYPE
    w1 = p["w1"].astype(cdt)
    w2 = p["w2"].astype(cdt)
    w3 = p["w3"].astype(cdt)
    # Fused rot/tr fc1: (1152, 1024), block-indexed by j into (128, 1024).
    w1rt = jnp.concatenate([p["w1r"], p["w1t"]], axis=1).astype(cdt)
    b1rt = jnp.concatenate([p["b1r"], p["b1t"]], axis=1)              # f32 (1,1024)
    w2r = p["w2r"].astype(cdt)
    w2t = p["w2t"].astype(cdt)
    # Fused final projection: rows 0:256 = fc_rot -> lanes 0:4,
    #                         rows 256:512 = fc_tr -> lanes 4:7.
    wout = (jnp.zeros((512, 128), jnp.float32)
            .at[0:256, 0:4].set(p["wr"])
            .at[256:512, 4:7].set(p["wt"])).astype(cdt)
    bout = (jnp.zeros((1, 128), jnp.float32)
            .at[:, 0:4].set(p["br"])
            .at[:, 4:7].set(p["bt"]))

    args = [X,
            w1, p["b1"], w2, p["b2"], w3, p["b3"],
            w1rt, b1rt,
            w2r, p["b2r"], w2t, p["b2t"],
            wout, bout]

    def _const(a):
        z = (0,) * a.ndim
        return pl.BlockSpec(a.shape, lambda b, j, g, _z=z: _z)

    x_spec = pl.BlockSpec((None, None, Gk * Bt, nIn),
                          lambda b, j, g: (j, b, g, 0))
    w1rt_spec = pl.BlockSpec((128, 1024), lambda b, j, g: (j, 0))

    in_specs = [x_spec,
                _const(w1), _const(p["b1"]),
                _const(w2), _const(p["b2"]),
                _const(w3), _const(p["b3"]),
                w1rt_spec, _const(b1rt),
                _const(w2r), _const(p["b2r"]),
                _const(w2t), _const(p["b2t"]),
                _const(wout), _const(bout)]

    out_spec = pl.BlockSpec((Bt, 128), lambda b, j, g: (b, 0))

    out = pl.pallas_call(
        simple_pnp_kernel,
        out_shape=jax.ShapeDtypeStruct((B_pad, 128), jnp.float32),
        grid_spec=pltpu.PrefetchScalarGridSpec(
            num_scalar_prefetch=0,
            grid=(n_bt, 9, n_gt),
            in_specs=in_specs,
            out_specs=out_spec,
            scratch_shapes=[pltpu.VMEM((Bt, 128), jnp.float32),    # running max for this j
                            pltpu.VMEM((Bt, 1024), jnp.float32)],  # fused fc1 accumulator
        ),
        compiler_params=pltpu.CompilerParams(
            dimension_semantics=("parallel", "arbitrary", "arbitrary"),
            vmem_limit_bytes=vmem_limit_bytes,
        ),
    )(*args)

    return out[:B, :7]


def init_params(key, nIn):
    """Deterministic PyTorch-style (uniform +-1/sqrt(fan_in)) init."""
    def uni(k, shape, fan_in):
        bound = 1.0 / math.sqrt(fan_in)
        return jax.random.uniform(k, shape, jnp.float32, -bound, bound)

    ks = jax.random.split(key, 18)
    p = {}
    # Conv1d(nIn,128,1), Conv1d(128,128,1), Conv1d(128,128,1); stored as (in,out)
    p["w1"], p["b1"] = uni(ks[0], (nIn, 128), nIn), uni(ks[1], (1, 128), nIn)
    p["w2"], p["b2"] = uni(ks[2], (128, 128), 128), uni(ks[3], (1, 128), 128)
    p["w3"], p["b3"] = uni(ks[4], (128, 128), 128), uni(ks[5], (1, 128), 128)
    # rot branch: Linear(1152,512), Linear(512,256), Linear(256,4)
    p["w1r"], p["b1r"] = uni(ks[6], (1152, 512), 1152), uni(ks[7], (1, 512), 1152)
    p["w2r"], p["b2r"] = uni(ks[8], (512, 256), 512), uni(ks[9], (1, 256), 512)
    p["wr"], p["br"] = uni(ks[10], (256, 4), 256), uni(ks[11], (1, 4), 256)
    # tr branch: Linear(1152,512), Linear(512,256), Linear(256,3)
    p["w1t"], p["b1t"] = uni(ks[12], (1152, 512), 1152), uni(ks[13], (1, 512), 1152)
    p["w2t"], p["b2t"] = uni(ks[14], (512, 256), 512), uni(ks[15], (1, 256), 512)
    p["wt"], p["bt"] = uni(ks[16], (256, 3), 256), uni(ks[17], (1, 3), 256)
    return p


def reference_forward(x_ncw, p):
    """Pure-JAX f32 mirror of the PyTorch forward for verification."""
    B, nIn, N = x_ncw.shape
    x = jnp.transpose(x_ncw, (0, 2, 1))                 # (B, N, nIn)
    h = _leaky(x @ p["w1"] + p["b1"])
    h = _leaky(h @ p["w2"] + p["b2"])
    h = h @ p["w3"] + p["b3"]                           # (B, N, 128)
    h = h.reshape(B, N // 9, 9, 128)
    feat = jnp.max(h, axis=1).reshape(B, 1152)          # (B, 1152)

    rot = _leaky(feat @ p["w1r"] + p["b1r"])
    rot = _leaky(rot @ p["w2r"] + p["b2r"])
    rot = rot @ p["wr"] + p["br"]                       # (B, 4)

    tr = _leaky(feat @ p["w1t"] + p["b1t"])
    tr = _leaky(tr @ p["w2t"] + p["b2t"])
    tr = tr @ p["wt"] + p["bt"]                         # (B, 3)
    return jnp.concatenate([rot, tr], axis=1)           # (B, 7)


if __name__ == "__main__":
    key = jax.random.PRNGKey(0)
    kx1, kp1, kx2, kp2 = jax.random.split(key, 4)

    # bf16 MXU inputs vs f32 reference: tolerance sized for bf16 rounding
    # (f32 accumulation keeps the error to ~1% relative through 6 layers).
    TOL = dict(atol=5e-2, rtol=5e-2)

    # Test 1: tiny shapes (single batch tile, single group tile).
    B, nIn, N = 2, 4, 18
    x = jax.random.normal(kx1, (B, nIn, N), jnp.float32)
    params = init_params(kp1, nIn)
    out = jax.block_until_ready(simple_pnp_forward(x, params))
    ref = reference_forward(x, params)
    assert out.shape == (B, 7), out.shape
    assert jnp.allclose(out, ref, **TOL), (out, ref)

    # Test 2: batch padding (10->16), two batch tiles, group padding (16->18),
    # three group tiles.
    B2, nIn2, N2 = 10, 5, 144
    x2 = jax.random.normal(kx2, (B2, nIn2, N2), jnp.float32)
    params2 = init_params(kp2, nIn2)
    out2 = jax.block_until_ready(
        simple_pnp_forward(x2, params2, bt_max=8, gk_max=6))
    ref2 = reference_forward(x2, params2)
    assert out2.shape == (B2, 7), out2.shape
    assert jnp.allclose(out2, ref2, **TOL), (out2, ref2)

    print("KERNEL_OK")
</pallas_src>

<mosaic_0001>
module attributes {stable_mosaic.version = 11 : i64} {
  func.func @simple_pnp_kernel(%arg0: i32, %arg1: i32, %arg2: i32, %arg3: memref<1x1x16x4xf32, #tpu.memory_space<vmem>>, %arg4: memref<4x128xbf16, #tpu.memory_space<vmem>>, %arg5: memref<1x128xf32, #tpu.memory_space<vmem>>, %arg6: memref<128x128xbf16, #tpu.memory_space<vmem>>, %arg7: memref<1x128xf32, #tpu.memory_space<vmem>>, %arg8: memref<128x128xbf16, #tpu.memory_space<vmem>>, %arg9: memref<1x128xf32, #tpu.memory_space<vmem>>, %arg10: memref<128x1024xbf16, #tpu.memory_space<vmem>>, %arg11: memref<1x1024xf32, #tpu.memory_space<vmem>>, %arg12: memref<512x256xbf16, #tpu.memory_space<vmem>>, %arg13: memref<1x256xf32, #tpu.memory_space<vmem>>, %arg14: memref<512x256xbf16, #tpu.memory_space<vmem>>, %arg15: memref<1x256xf32, #tpu.memory_space<vmem>>, %arg16: memref<512x128xbf16, #tpu.memory_space<vmem>>, %arg17: memref<1x128xf32, #tpu.memory_space<vmem>>, %arg18: memref<8x128xf32, #tpu.memory_space<vmem>>, %arg19: memref<8x128xf32, #tpu.memory_space<vmem>>, %arg20: memref<8x1024xf32, #tpu.memory_space<vmem>>) attributes {dimension_semantics = [#tpu.dimension_semantics<parallel>, #tpu.dimension_semantics<arbitrary>, #tpu.dimension_semantics<arbitrary>], iteration_bounds = array<i64: 1, 9, 1>, scalar_prefetch = 0 : i64, scratch_operands = 2 : i64, tpu.core_type = #tpu.core_type<tc>, window_params = [{transform_indices = @transform_0, window_bounds = array<i64: 1, 1, 16, 4>}, {pipeline_mode = #tpu.pipeline_mode<synchronous>, transform_indices = @transform_1, window_bounds = array<i64: 4, 128>}, {pipeline_mode = #tpu.pipeline_mode<synchronous>, transform_indices = @transform_2, window_bounds = array<i64: 1, 128>}, {pipeline_mode = #tpu.pipeline_mode<synchronous>, transform_indices = @transform_3, window_bounds = array<i64: 128, 128>}, {pipeline_mode = #tpu.pipeline_mode<synchronous>, transform_indices = @transform_4, window_bounds = array<i64: 1, 128>}, {pipeline_mode = #tpu.pipeline_mode<synchronous>, transform_indices = @transform_5, window_bounds = array<i64: 128, 128>}, {pipeline_mode = #tpu.pipeline_mode<synchronous>, transform_indices = @transform_6, window_bounds = array<i64: 1, 128>}, {transform_indices = @transform_7, window_bounds = array<i64: 128, 1024>}, {pipeline_mode = #tpu.pipeline_mode<synchronous>, transform_indices = @transform_8, window_bounds = array<i64: 1, 1024>}, {pipeline_mode = #tpu.pipeline_mode<synchronous>, transform_indices = @transform_9, window_bounds = array<i64: 512, 256>}, {pipeline_mode = #tpu.pipeline_mode<synchronous>, transform_indices = @transform_10, window_bounds = array<i64: 1, 256>}, {pipeline_mode = #tpu.pipeline_mode<synchronous>, transform_indices = @transform_11, window_bounds = array<i64: 512, 256>}, {pipeline_mode = #tpu.pipeline_mode<synchronous>, transform_indices = @transform_12, window_bounds = array<i64: 1, 256>}, {pipeline_mode = #tpu.pipeline_mode<synchronous>, transform_indices = @transform_13, window_bounds = array<i64: 512, 128>}, {pipeline_mode = #tpu.pipeline_mode<synchronous>, transform_indices = @transform_14, window_bounds = array<i64: 1, 128>}, {transform_indices = @transform_15, window_bounds = array<i64: 8, 128>}]} {
    %c0 = arith.constant 0 : index
    %c0_0 = arith.constant 0 : index
    %c0_1 = arith.constant 0 : index
    %c0_2 = arith.constant 0 : index
    %0 = vector.load %arg3[%c0, %c0_0, %c0_1, %c0_2] : memref<1x1x16x4xf32, #tpu.memory_space<vmem>>, vector<1x1x16x4xf32>
    %1 = vector.shape_cast %0 : vector<1x1x16x4xf32> to vector<16x4xf32>
    %2 = arith.truncf %1 : vector<16x4xf32> to vector<16x4xbf16>
    %c0_3 = arith.constant 0 : index
    %c0_4 = arith.constant 0 : index
    %3 = vector.load %arg4[%c0_3, %c0_4] : memref<4x128xbf16, #tpu.memory_space<vmem>>, vector<4x128xbf16>
    %cst = arith.constant dense<0.000000e+00> : vector<16x128xf32>
    %4 = tpu.matmul %2, %3, %cst {dimension_numbers = #tpu.dot_dimension_numbers<[1], [0], [0], [1], [0, 0, 1, 1], [], []>} : vector<16x4xbf16>, vector<4x128xbf16>, vector<16x128xf32> -> vector<16x128xf32>
    %c0_5 = arith.constant 0 : index
    %c0_6 = arith.constant 0 : index
    %5 = vector.load %arg5[%c0_5, %c0_6] : memref<1x128xf32, #tpu.memory_space<vmem>>, vector<1x128xf32>
    %6 = vector.broadcast %5 : vector<1x128xf32> to vector<16x128xf32>
    %7 = arith.addf %4, %6 : vector<16x128xf32>
    %cst_7 = arith.constant 1.000000e-01 : f32
    %8 = vector.broadcast %cst_7 : f32 to vector<16x128xf32>
    %9 = arith.mulf %8, %7 : vector<16x128xf32>
    %10 = arith.maximumf %7, %9 : vector<16x128xf32>
    %11 = arith.truncf %10 : vector<16x128xf32> to vector<16x128xbf16>
    %c0_8 = arith.constant 0 : index
    %c0_9 = arith.constant 0 : index
    %12 = vector.load %arg6[%c0_8, %c0_9] : memref<128x128xbf16, #tpu.memory_space<vmem>>, vector<128x128xbf16>
    %cst_10 = arith.constant dense<0.000000e+00> : vector<16x128xf32>
    %13 = tpu.matmul %11, %12, %cst_10 {dimension_numbers = #tpu.dot_dimension_numbers<[1], [0], [0], [1], [0, 0, 1, 1], [], []>} : vector<16x128xbf16>, vector<128x128xbf16>, vector<16x128xf32> -> vector<16x128xf32>
    %c0_11 = arith.constant 0 : index
    %c0_12 = arith.constant 0 : index
    %14 = vector.load %arg7[%c0_11, %c0_12] : memref<1x128xf32, #tpu.memory_space<vmem>>, vector<1x128xf32>
    %15 = vector.broadcast %14 : vector<1x128xf32> to vector<16x128xf32>
    %16 = arith.addf %13, %15 : vector<16x128xf32>
    %cst_13 = arith.constant 1.000000e-01 : f32
    %17 = vector.broadcast %cst_13 : f32 to vector<16x128xf32>
    %18 = arith.mulf %17, %16 : vector<16x128xf32>
    %19 = arith.maximumf %16, %18 : vector<16x128xf32>
    %20 = arith.truncf %19 : vector<16x128xf32> to vector<16x128xbf16>
    %c0_14 = arith.constant 0 : index
    %c0_15 = arith.constant 0 : index
    %21 = vector.load %arg8[%c0_14, %c0_15] : memref<128x128xbf16, #tpu.memory_space<vmem>>, vector<128x128xbf16>
    %cst_16 = arith.constant dense<0.000000e+00> : vector<16x128xf32>
    %22 = tpu.matmul %20, %21, %cst_16 {dimension_numbers = #tpu.dot_dimension_numbers<[1], [0], [0], [1], [0, 0, 1, 1], [], []>} : vector<16x128xbf16>, vector<128x128xbf16>, vector<16x128xf32> -> vector<16x128xf32>
    %c0_17 = arith.constant 0 : index
    %c0_18 = arith.constant 0 : index
    %23 = vector.load %arg9[%c0_17, %c0_18] : memref<1x128xf32, #tpu.memory_space<vmem>>, vector<1x128xf32>
    %24 = vector.broadcast %23 : vector<1x128xf32> to vector<16x128xf32>
    %25 = arith.addf %22, %24 : vector<16x128xf32>
    %26 = vector.extract_strided_slice %25 {offsets = [0, 0], sizes = [8, 128], strides = [1, 1]} : vector<16x128xf32> to vector<8x128xf32>
    %27 = vector.extract_strided_slice %25 {offsets = [8, 0], sizes = [8, 128], strides = [1, 1]} : vector<16x128xf32> to vector<8x128xf32>
    %28 = arith.maximumf %26, %27 : vector<8x128xf32>
    %c0_i32 = arith.constant 0 : i32
    %29 = arith.cmpi eq, %arg2, %c0_i32 : i32
    %30 = arith.extui %29 : i1 to i32
    %c0_i32_19 = arith.constant 0 : i32
    %31 = arith.cmpi ne, %30, %c0_i32_19 : i32
    scf.if %31 {
      %c0_24 = arith.constant 0 : index
      %c0_25 = arith.constant 0 : index
      %38 = vector.load %arg19[%c0_24, %c0_25] : memref<8x128xf32, #tpu.memory_space<vmem>>, vector<8x128xf32>
      tpu.vector_store %arg19[%c0_24, %c0_25], %28 {strides = array<i32>} : memref<8x128xf32, #tpu.memory_space<vmem>>, vector<8x128xf32>,
    } else {
    }
    %c0_i32_20 = arith.constant 0 : i32
    %32 = arith.cmpi sgt, %arg2, %c0_i32_20 : i32
    %33 = arith.extui %32 : i1 to i32
    %c0_i32_21 = arith.constant 0 : i32
    %34 = arith.cmpi ne, %33, %c0_i32_21 : i32
    scf.if %34 {
      %c0_24 = arith.constant 0 : index
      %c0_25 = arith.constant 0 : index
      %38 = vector.load %arg19[%c0_24, %c0_25] : memref<8x128xf32, #tpu.memory_space<vmem>>, vector<8x128xf32>
      %39 = arith.maximumf %38, %28 : vector<8x128xf32>
      %c0_26 = arith.constant 0 : index
      %c0_27 = arith.constant 0 : index
      %40 = vector.load %arg19[%c0_26, %c0_27] : memref<8x128xf32, #tpu.memory_space<vmem>>, vector<8x128xf32>
      tpu.vector_store %arg19[%c0_26, %c0_27], %39 {strides = array<i32>} : memref<8x128xf32, #tpu.memory_space<vmem>>, vector<8x128xf32>,
    } else {
    }
    %c0_i32_22 = arith.constant 0 : i32
    %35 = arith.cmpi eq, %arg2, %c0_i32_22 : i32
    %36 = arith.extui %35 : i1 to i32
    %c0_i32_23 = arith.constant 0 : i32
    %37 = arith.cmpi ne, %36, %c0_i32_23 : i32
    scf.if %37 {
      %c0_24 = arith.constant 0 : index
      %c0_25 = arith.constant 0 : index
      %38 = vector.load %arg19[%c0_24, %c0_25] : memref<8x128xf32, #tpu.memory_space<vmem>>, vector<8x128xf32>
      %39 = arith.truncf %38 : vector<8x128xf32> to vector<8x128xbf16>
      %c0_26 = arith.constant 0 : index
      %c0_27 = arith.constant 0 : index
      %40 = vector.load %arg10[%c0_26, %c0_27] : memref<128x1024xbf16, #tpu.memory_space<vmem>>, vector<128x1024xbf16>
      %cst_28 = arith.constant dense<0.000000e+00> : vector<8x1024xf32>
      %41 = tpu.matmul %39, %40, %cst_28 {dimension_numbers = #tpu.dot_dimension_numbers<[1], [0], [0], [1], [0, 0, 1, 1], [], []>} : vector<8x128xbf16>, vector<128x1024xbf16>, vector<8x1024xf32> -> vector<8x1024xf32>
      %c0_i32_29 = arith.constant 0 : i32
      %42 = arith.cmpi eq, %arg1, %c0_i32_29 : i32
      %43 = arith.extui %42 : i1 to i32
      %c0_i32_30 = arith.constant 0 : i32
      %44 = arith.cmpi ne, %43, %c0_i32_30 : i32
      scf.if %44 {
        %c0_34 = arith.constant 0 : index
        %c0_35 = arith.constant 0 : index
        %51 = vector.load %arg11[%c0_34, %c0_35] : memref<1x1024xf32, #tpu.memory_space<vmem>>, vector<1x1024xf32>
        %52 = vector.broadcast %51 : vector<1x1024xf32> to vector<8x1024xf32>
        %53 = arith.addf %41, %52 : vector<8x1024xf32>
        %c0_36 = arith.constant 0 : index
        %c0_37 = arith.constant 0 : index
        %54 = vector.load %arg20[%c0_36, %c0_37] : memref<8x1024xf32, #tpu.memory_space<vmem>>, vector<8x1024xf32>
        tpu.vector_store %arg20[%c0_36, %c0_37], %53 {strides = array<i32>} : memref<8x1024xf32, #tpu.memory_space<vmem>>, vector<8x1024xf32>,
      } else {
      }
      %c0_i32_31 = arith.constant 0 : i32
      %45 = arith.cmpi sgt, %arg1, %c0_i32_31 : i32
      %46 = arith.extui %45 : i1 to i32
      %c0_i32_32 = arith.constant 0 : i32
      %47 = arith.cmpi ne, %46, %c0_i32_32 : i32
      scf.if %47 {
        %c0_34 = arith.constant 0 : index
        %c0_35 = arith.constant 0 : index
        %51 = vector.load %arg20[%c0_34, %c0_35] : memref<8x1024xf32, #tpu.memory_space<vmem>>, vector<8x1024xf32>
        %52 = arith.addf %51, %41 : vector<8x1024xf32>
        %c0_36 = arith.constant 0 : index
        %c0_37 = arith.constant 0 : index
        %53 = vector.load %arg20[%c0_36, %c0_37] : memref<8x1024xf32, #tpu.memory_space<vmem>>, vector<8x1024xf32>
        tpu.vector_store %arg20[%c0_36, %c0_37], %52 {strides = array<i32>} : memref<8x1024xf32, #tpu.memory_space<vmem>>, vector<8x1024xf32>,
      } else {
      }
      %c8_i32 = arith.constant 8 : i32
      %48 = arith.cmpi eq, %arg1, %c8_i32 : i32
      %49 = arith.extui %48 : i1 to i32
      %c0_i32_33 = arith.constant 0 : i32
      %50 = arith.cmpi ne, %49, %c0_i32_33 : i32
      scf.if %50 {
        %c0_34 = arith.constant 0 : index
        %c0_35 = arith.constant 0 : index
        %51 = vector.load %arg20[%c0_34, %c0_35] : memref<8x1024xf32, #tpu.memory_space<vmem>>, vector<8x1024xf32>
        %cst_36 = arith.constant 1.000000e-01 : f32
        %52 = vector.broadcast %cst_36 : f32 to vector<8x1024xf32>
        %53 = arith.mulf %52, %51 : vector<8x1024xf32>
        %54 = arith.maximumf %51, %53 : vector<8x1024xf32>
        %55 = vector.extract_strided_slice %54 {offsets = [0, 0], sizes = [8, 512], strides = [1, 1]} : vector<8x1024xf32> to vector<8x512xf32>
        %56 = arith.truncf %55 : vector<8x512xf32> to vector<8x512xbf16>
        %c0_37 = arith.constant 0 : index
        %c0_38 = arith.constant 0 : index
        %57 = vector.load %arg12[%c0_37, %c0_38] : memref<512x256xbf16, #tpu.memory_space<vmem>>, vector<512x256xbf16>
        %cst_39 = arith.constant dense<0.000000e+00> : vector<8x256xf32>
        %58 = tpu.matmul %56, %57, %cst_39 {dimension_numbers = #tpu.dot_dimension_numbers<[1], [0], [0], [1], [0, 0, 1, 1], [], []>} : vector<8x512xbf16>, vector<512x256xbf16>, vector<8x256xf32> -> vector<8x256xf32>
        %c0_40 = arith.constant 0 : index
        %c0_41 = arith.constant 0 : index
        %59 = vector.load %arg13[%c0_40, %c0_41] : memref<1x256xf32, #tpu.memory_space<vmem>>, vector<1x256xf32>
        %60 = vector.broadcast %59 : vector<1x256xf32> to vector<8x256xf32>
        %61 = arith.addf %58, %60 : vector<8x256xf32>
        %cst_42 = arith.constant 1.000000e-01 : f32
        %62 = vector.broadcast %cst_42 : f32 to vector<8x256xf32>
        %63 = arith.mulf %62, %61 : vector<8x256xf32>
        %64 = arith.maximumf %61, %63 : vector<8x256xf32>
        %65 = vector.extract_strided_slice %54 {offsets = [0, 512], sizes = [8, 512], strides = [1, 1]} : vector<8x1024xf32> to vector<8x512xf32>
        %66 = arith.truncf %65 : vector<8x512xf32> to vector<8x512xbf16>
        %c0_43 = arith.constant 0 : index
        %c0_44 = arith.constant 0 : index
        %67 = vector.load %arg14[%c0_43, %c0_44] : memref<512x256xbf16, #tpu.memory_space<vmem>>, vector<512x256xbf16>
        %cst_45 = arith.constant dense<0.000000e+00> : vector<8x256xf32>
        %68 = tpu.matmul %66, %67, %cst_45 {dimension_numbers = #tpu.dot_dimension_numbers<[1], [0], [0], [1], [0, 0, 1, 1], [], []>} : vector<8x512xbf16>, vector<512x256xbf16>, vector<8x256xf32> -> vector<8x256xf32>
        %c0_46 = arith.constant 0 : index
        %c0_47 = arith.constant 0 : index
        %69 = vector.load %arg15[%c0_46, %c0_47] : memref<1x256xf32, #tpu.memory_space<vmem>>, vector<1x256xf32>
        %70 = vector.broadcast %69 : vector<1x256xf32> to vector<8x256xf32>
        %71 = arith.addf %68, %70 : vector<8x256xf32>
        %cst_48 = arith.constant 1.000000e-01 : f32
        %72 = vector.broadcast %cst_48 : f32 to vector<8x256xf32>
        %73 = arith.mulf %72, %71 : vector<8x256xf32>
        %74 = arith.maximumf %71, %73 : vector<8x256xf32>
        %75 = tpu.concatenate %64, %74 in 1 : vector<8x256xf32>, vector<8x256xf32> -> vector<8x512xf32>
        %76 = arith.truncf %75 : vector<8x512xf32> to vector<8x512xbf16>
        %c0_49 = arith.constant 0 : index
        %c0_50 = arith.constant 0 : index
        %77 = vector.load %arg16[%c0_49, %c0_50] : memref<512x128xbf16, #tpu.memory_space<vmem>>, vector<512x128xbf16>
        %cst_51 = arith.constant dense<0.000000e+00> : vector<8x128xf32>
        %78 = tpu.matmul %76, %77, %cst_51 {dimension_numbers = #tpu.dot_dimension_numbers<[1], [0], [0], [1], [0, 0, 1, 1], [], []>} : vector<8x512xbf16>, vector<512x128xbf16>, vector<8x128xf32> -> vector<8x128xf32>
        %c0_52 = arith.constant 0 : index
        %c0_53 = arith.constant 0 : index
        %79 = vector.load %arg17[%c0_52, %c0_53] : memref<1x128xf32, #tpu.memory_space<vmem>>, vector<1x128xf32>
        %80 = vector.broadcast %79 : vector<1x128xf32> to vector<8x128xf32>
        %81 = arith.addf %78, %80 : vector<8x128xf32>
        %c0_54 = arith.constant 0 : index
        %c0_55 = arith.constant 0 : index
        %82 = vector.load %arg18[%c0_54, %c0_55] : memref<8x128xf32, #tpu.memory_space<vmem>>, vector<8x128xf32>
        tpu.vector_store %arg18[%c0_54, %c0_55], %81 {strides = array<i32>} : memref<8x128xf32, #tpu.memory_space<vmem>>, vector<8x128xf32>,
      } else {
      }
    } else {
    }
    return
  }
  func.func @transform_0(%arg0: i32, %arg1: i32, %arg2: i32) -> (i32, i32, i32, i32) {
    %c0_i32 = arith.constant 0 : i32
    %c0_i32_0 = arith.constant 0 : i32
    return %arg1, %arg0, %arg2, %c0_i32 : i32, i32, i32, i32
  }
  func.func @transform_1(%arg0: i32, %arg1: i32, %arg2: i32) -> (i32, i32) {
    %c0_i32 = arith.constant 0 : i32
    %c0_i32_0 = arith.constant 0 : i32
    %c0_i32_1 = arith.constant 0 : i32
    return %c0_i32, %c0_i32_0 : i32, i32
  }
  func.func @transform_2(%arg0: i32, %arg1: i32, %arg2: i32) -> (i32, i32) {
    %c0_i32 = arith.constant 0 : i32
    %c0_i32_0 = arith.constant 0 : i32
    %c0_i32_1 = arith.constant 0 : i32
    return %c0_i32, %c0_i32_0 : i32, i32
  }
  func.func @transform_3(%arg0: i32, %arg1: i32, %arg2: i32) -> (i32, i32) {
    %c0_i32 = arith.constant 0 : i32
    %c0_i32_0 = arith.constant 0 : i32
    %c0_i32_1 = arith.constant 0 : i32
    return %c0_i32, %c0_i32_0 : i32, i32
  }
  func.func @transform_4(%arg0: i32, %arg1: i32, %arg2: i32) -> (i32, i32) {
    %c0_i32 = arith.constant 0 : i32
    %c0_i32_0 = arith.constant 0 : i32
    %c0_i32_1 = arith.constant 0 : i32
    return %c0_i32, %c0_i32_0 : i32, i32
  }
  func.func @transform_5(%arg0: i32, %arg1: i32, %arg2: i32) -> (i32, i32) {
    %c0_i32 = arith.constant 0 : i32
    %c0_i32_0 = arith.constant 0 : i32
    %c0_i32_1 = arith.constant 0 : i32
    return %c0_i32, %c0_i32_0 : i32, i32
  }
  func.func @transform_6(%arg0: i32, %arg1: i32, %arg2: i32) -> (i32, i32) {
    %c0_i32 = arith.constant 0 : i32
    %c0_i32_0 = arith.constant 0 : i32
    %c0_i32_1 = arith.constant 0 : i32
    return %c0_i32, %c0_i32_0 : i32, i32
  }
  func.func @transform_7(%arg0: i32, %arg1: i32, %arg2: i32) -> (i32, i32) {
    %c0_i32 = arith.constant 0 : i32
    %c0_i32_0 = arith.constant 0 : i32
    return %arg1, %c0_i32 : i32, i32
  }
  func.func @transform_8(%arg0: i32, %arg1: i32, %arg2: i32) -> (i32, i32) {
    %c0_i32 = arith.constant 0 : i32
    %c0_i32_0 = arith.constant 0 : i32
    %c0_i32_1 = arith.constant 0 : i32
    return %c0_i32, %c0_i32_0 : i32, i32
  }
  func.func @transform_9(%arg0: i32, %arg1: i32, %arg2: i32) -> (i32, i32) {
    %c0_i32 = arith.constant 0 : i32
    %c0_i32_0 = arith.constant 0 : i32
    %c0_i32_1 = arith.constant 0 : i32
    return %c0_i32, %c0_i32_0 : i32, i32
  }
  func.func @transform_10(%arg0: i32, %arg1: i32, %arg2: i32) -> (i32, i32) {
    %c0_i32 = arith.constant 0 : i32
    %c0_i32_0 = arith.constant 0 : i32
    %c0_i32_1 = arith.constant 0 : i32
    return %c0_i32, %c0_i32_0 : i32, i32
  }
  func.func @transform_11(%arg0: i32, %arg1: i32, %arg2: i32) -> (i32, i32) {
    %c0_i32 = arith.constant 0 : i32
    %c0_i32_0 = arith.constant 0 : i32
    %c0_i32_1 = arith.constant 0 : i32
    return %c0_i32, %c0_i32_0 : i32, i32
  }
  func.func @transform_12(%arg0: i32, %arg1: i32, %arg2: i32) -> (i32, i32) {
    %c0_i32 = arith.constant 0 : i32
    %c0_i32_0 = arith.constant 0 : i32
    %c0_i32_1 = arith.constant 0 : i32
    return %c0_i32, %c0_i32_0 : i32, i32
  }
  func.func @transform_13(%arg0: i32, %arg1: i32, %arg2: i32) -> (i32, i32) {
    %c0_i32 = arith.constant 0 : i32
    %c0_i32_0 = arith.constant 0 : i32
    %c0_i32_1 = arith.constant 0 : i32
    return %c0_i32, %c0_i32_0 : i32, i32
  }
  func.func @transform_14(%arg0: i32, %arg1: i32, %arg2: i32) -> (i32, i32) {
    %c0_i32 = arith.constant 0 : i32
    %c0_i32_0 = arith.constant 0 : i32
    %c0_i32_1 = arith.constant 0 : i32
    return %c0_i32, %c0_i32_0 : i32, i32
  }
  func.func @transform_15(%arg0: i32, %arg1: i32, %arg2: i32) -> (i32, i32) {
    %c0_i32 = arith.constant 0 : i32
    %c0_i32_0 = arith.constant 0 : i32
    return %arg0, %c0_i32 : i32, i32
  }
}

</mosaic_0001>

<llo_original>
// kernel: tpu_custom_call.1
$region0: #{tpu_custom_call.1}
  #allocation0 [shape = 'u32[]', space=smem, size = 0x4, offset = 0x4, fixed_abs, tag = 'smem constant byte address 0x4 - core index']
  #allocation1 [shape = 'u32[72,128]{1,0:T(1,128)}', space=vmem, size = 0x9000, scoped, tag = 'internal scratch']
  #allocation2 [shape = 'f32[8,128]{1,0:T(8,128)}', space=vmem, size = 0x1000, scoped, tag = 'scratch operand']
  #allocation3 [shape = 'f32[8,1024]{1,0:T(8,128)}', space=vmem, size = 0x8000, scoped, tag = 'scratch operand']
  %s0 = inlined_call_operand.vmem [shape: f32[9,1,16,4], index: 0, kind: input, shape index: {}]
  %s1 = inlined_call_operand.hbm [shape: bf16[4,128], index: 1, kind: input, shape index: {}]
  %s2 = inlined_call_operand.hbm [shape: f32[1,128], index: 2, kind: input, shape index: {}]
  %s3 = inlined_call_operand.hbm [shape: bf16[128,128], index: 3, kind: input, shape index: {}]
  %s4 = inlined_call_operand.hbm [shape: f32[1,128], index: 4, kind: input, shape index: {}]
  %s5 = inlined_call_operand.hbm [shape: bf16[128,128], index: 5, kind: input, shape index: {}]
  %s6 = inlined_call_operand.hbm [shape: f32[1,128], index: 6, kind: input, shape index: {}]
  %s7 = inlined_call_operand.hbm [shape: bf16[1152,1024], index: 7, kind: input, shape index: {}]
  %s8 = inlined_call_operand.hbm [shape: f32[1,1024], index: 8, kind: input, shape index: {}]
  %s9 = inlined_call_operand.hbm [shape: bf16[512,256], index: 9, kind: input, shape index: {}]
  %s10 = inlined_call_operand.hbm [shape: f32[1,256], index: 10, kind: input, shape index: {}]
  %s11 = inlined_call_operand.hbm [shape: bf16[512,256], index: 11, kind: input, shape index: {}]
  %s12 = inlined_call_operand.hbm [shape: f32[1,256], index: 12, kind: input, shape index: {}]
  %s13 = inlined_call_operand.hbm [shape: bf16[512,128], index: 13, kind: input, shape index: {}]
  %s14 = inlined_call_operand.hbm [shape: f32[1,128], index: 14, kind: input, shape index: {}]
  %s15 = inlined_call_operand.hbm [shape: f32[8,128], index: 15, kind: output, shape index: {}]
  %s16 = sld [smem:[#allocation0]]
  $region173: #{tpu_custom_call.1} parent=0
    _
  %s18 = ssub.s32 1, %s16
  %s19 = scalar_select 0, %s18, %s16
  $region1: #{tpu_custom_call.1} parent=0
    #allocation4 [shape = 'u8[1024]{0}', space=vmem, size = 0x400, scoped, tag = 'input window, operand 1, single buffered']
    #allocation5 [shape = 's32[2]{0}', space=sflag, size = 0x8, scoped, tag = 'scoped memory for tpu_custom_call.1']
    #allocation6 [shape = 's32[2]{0}', space=sflag, size = 0x8, scoped, tag = 'scoped memory for tpu_custom_call.1']
    #allocation7 [shape = 'u8[512]{0}', space=vmem, size = 0x400, scoped, tag = 'input window, operand 2, single buffered']
    #allocation8 [shape = 's32[1]{0}', space=sflag, size = 0x4, scoped, tag = 'scoped memory for tpu_custom_call.1']
    #allocation9 [shape = 'u8[32768]{0}', space=vmem, size = 0x8000, scoped, tag = 'input window, operand 3, single buffered']
    #allocation10 [shape = 'u8[512]{0}', space=vmem, size = 0x400, scoped, tag = 'input window, operand 4, single buffered']
    #allocation11 [shape = 's32[1]{0}', space=sflag, size = 0x4, scoped, tag = 'scoped memory for tpu_custom_call.1']
    #allocation12 [shape = 'u8[32768]{0}', space=vmem, size = 0x8000, scoped, tag = 'input window, operand 5, single buffered']
    #allocation13 [shape = 'u8[512]{0}', space=vmem, size = 0x400, scoped, tag = 'input window, operand 6, single buffered']
    #allocation14 [shape = 's32[1]{0}', space=sflag, size = 0x4, scoped, tag = 'scoped memory for tpu_custom_call.1']
    #allocation15 [shape = 'u8[524288]{0}', space=vmem, size = 0x80000, scoped, tag = 'input window, operand 7']
    #allocation16 [shape = 'u8[4096]{0}', space=vmem, size = 0x1000, scoped, tag = 'input window, operand 8, single buffered']
    #allocation17 [shape = 'u8[262144]{0}', space=vmem, size = 0x40000, scoped, tag = 'input window, operand 9, single buffered']
    #allocation18 [shape = 'u8[1024]{0}', space=vmem, size = 0x400, scoped, tag = 'input window, operand 10, single buffered']
    #allocation19 [shape = 'u8[262144]{0}', space=vmem, size = 0x40000, scoped, tag = 'input window, operand 11, single buffered']
    #allocation20 [shape = 's32[1]{0}', space=sflag, size = 0x4, scoped, tag = 'scoped memory for tpu_custom_call.1']
    #allocation21 [shape = 'u8[1024]{0}', space=vmem, size = 0x400, scoped, tag = 'input window, operand 12, single buffered']
    #allocation22 [shape = 'u8[131072]{0}', space=vmem, size = 0x20000, scoped, tag = 'input window, operand 13, single buffered']
    #allocation23 [shape = 's32[1]{0}', space=sflag, size = 0x4, scoped, tag = 'scoped memory for tpu_custom_call.1']
    #allocation24 [shape = 'u8[512]{0}', space=vmem, size = 0x400, scoped, tag = 'input window, operand 14, single buffered']
    #allocation25 [shape = 'u8[4096]{0}', space=vmem, size = 0x1000, scoped, tag = 'output window, operand 0, single buffered']
    %20 = vsyncpa [#allocation5], 0
    %21 = vsyncpa [#allocation8], 0
    %22 = vsyncpa [#allocation11], 0
    %23 = vsyncpa [#allocation14], 0
    %24 = vsyncpa [#allocation20], 0
    %25 = vsyncpa [#allocation23], 0
    %26 = vsyncpa [#allocation6], 0
    loop: start=0, step=1, limit=11
    $region2: #{tpu_custom_call.1} parent=1 // loop_pre_header
      _
    $region3: #{tpu_custom_call.1} parent=1 // loop_header
      %s28 = sphi 0, %s32
      %p29 = scmp.ge.s32.totalorder %s28, 11
      %s35 = sphi 0, %s54
      %s36 = sphi 0, %s50
      %s37 = sphi 0, %s46
      %s38 = sphi 0, %s35
      %s39 = sphi 0, %s36
      %s40 = sphi 0, %s37
      %s41 = sphi 0, %s38
      %s42 = sphi 0, %s39
      %s43 = sphi 0, %s40
      %s61 = sphi 0, %s63
      %s64 = sphi 0, %s61
      %s65 = sphi 0, %s64
      %s81 = sphi 0, %s65
      %s85 = sphi 0, %s85
      %s87 = sphi 0, %s85
      %s88 = sphi 0, %s87
      %s102 = sphi 0, %s88
      %s106 = sphi 0, %s106
      %s108 = sphi 0, %s106
      %s109 = sphi 0, %s108
      %s123 = sphi 0, %s109
      %s127 = sphi 0, %s127
      %s129 = sphi 0, %s127
      %s130 = sphi 0, %s129
      %s144 = sphi 0, %s130
      %s148 = sphi 0, %s148
      %s150 = sphi 0, %s148
      %s151 = sphi 0, %s150
      %s165 = sphi 0, %s151
      %s169 = sphi 0, %s169
      %s171 = sphi 0, %s169
      %s172 = sphi 0, %s171
      %s186 = sphi 0, %s172
      %s190 = sphi 0, %s190
      %s192 = sphi 0, %s190
      %s193 = sphi 0, %s192
      %s207 = sphi 0, %s193
      %s213 = sphi 0, %s215
      %s216 = sphi 0, %s213
      %s217 = sphi 0, %s216
      %s233 = sphi 0, %s217
      %s237 = sphi 0, %s237
      %s239 = sphi 0, %s237
      %s240 = sphi 0, %s239
      %s254 = sphi 0, %s240
      %s258 = sphi 0, %s258
      %s260 = sphi 0, %s258
      %s261 = sphi 0, %s260
      %s275 = sphi 0, %s261
      %s279 = sphi 0, %s279
      %s281 = sphi 0, %s279
      %s282 = sphi 0, %s281
      %s296 = sphi 0, %s282
      %s300 = sphi 0, %s300
      %s302 = sphi 0, %s300
      %s303 = sphi 0, %s302
      %s317 = sphi 0, %s303
      %s321 = sphi 0, %s321
      %s323 = sphi 0, %s321
      %s324 = sphi 0, %s323
      %s338 = sphi 0, %s324
      %s342 = sphi 0, %s342
      %s344 = sphi 0, %s342
      %s345 = sphi 0, %s344
      %s359 = sphi 0, %s345
      %s363 = sphi 0, %s363
      %s365 = sphi 0, %s363
      %s366 = sphi 0, %s365
      %s380 = sphi 0, %s366
      %s386 = sphi 0, %s388
      %s389 = sphi 0, %s386
      %s390 = sphi 0, %s389
      %s406 = sphi 0, %s390
    $region4: #{tpu_custom_call.1} parent=1 // loop_header_branch
      %31 = sbr.rel (%p29) target = $region8
    $region5: #{tpu_custom_call.1} parent=1 // loop_body
      %s33 = ssub.s32 %s28, 1
      %s34 = ssub.s32 %s28, 2
      %s44 = sadd.s32 1, %s37
      %p45 = scmp.ge.s32.totalorder %s44, 1
      %s46 = scalar_select %p45, 0, %s44
      %s47 = sadd.s32 1, %s36
      %s48 = scalar_select %p45, %s47, %s36
      %p49 = scmp.ge.s32.totalorder %s48, 9
      %s50 = scalar_select %p49, 0, %s48
      %s51 = sadd.s32 1, %s35
      %s52 = scalar_select %p49, %s51, %s35
      %p53 = scmp.ge.s32.totalorder %s52, 1
      %s54 = scalar_select %p53, 0, %s52
      %s55 = ssub.s32 %s36, %s50
      %s56 = ssub.s32 %s35, %s54
      %s57 = sor.u32 %s55, %s56
      %s58 = ssub.s32 %s37, %s46
      %s59 = sor.u32 %s57, %s58
      %p60 = scmp.eq.s32.totalorder %s59, 0
      %s62 = sadd.s32 %s61, 1
      %s63 = scalar_select %p60, %s61, %s62
      %p66 = pneg %p60
      %p67 = scmp.eq.s32.totalorder %s28, 8
      %p68 = por %p66, %p67
      %p69 = scmp.ne.s32.totalorder %s61, %s64
      %p70 = scmp.eq.s32.totalorder %s28, 0
      %p71 = por %p69, %p70
      %p72 = scmp.ne.s32.totalorder %s61, %s64
      %p73 = scmp.eq.s32.totalorder %s33, 8
      %p74 = por %p72, %p73
      %p75 = scmp.ne.s32.totalorder %s64, %s65
      %p76 = scmp.eq.s32.totalorder %s33, 0
      %p77 = por %p75, %p76
      %p78 = scmp.ne.s32.totalorder %s64, %s65
      %p79 = scmp.eq.s32.totalorder %s34, 8
      %p80 = por %p78, %p79
      %p82 = scmp.ne.s32.totalorder %s65, %s81
      %p83 = scmp.eq.s32.totalorder %s34, 0
      %p84 = por %p82, %p83
      %s86 = sadd.s32 %s85, 1
      %p89 = scmp.eq.s32.totalorder %s28, 8
      %p90 = scmp.ne.s32.totalorder %s85, %s87
      %p91 = scmp.eq.s32.totalorder %s28, 0
      %p92 = por %p90, %p91
      %p93 = scmp.ne.s32.totalorder %s85, %s87
      %p94 = scmp.eq.s32.totalorder %s33, 8
      %p95 = por %p93, %p94
      %p96 = scmp.ne.s32.totalorder %s87, %s88
      %p97 = scmp.eq.s32.totalorder %s33, 0
      %p98 = por %p96, %p97
      %p99 = scmp.ne.s32.totalorder %s87, %s88
      %p100 = scmp.eq.s32.totalorder %s34, 8
      %p101 = por %p99, %p100
      %p103 = scmp.ne.s32.totalorder %s88, %s102
      %p104 = scmp.eq.s32.totalorder %s34, 0
      %p105 = por %p103, %p104
      %s107 = sadd.s32 %s106, 1
      %p110 = scmp.eq.s32.totalorder %s28, 8
      %p111 = scmp.ne.s32.totalorder %s106, %s108
      %p112 = scmp.eq.s32.totalorder %s28, 0
      %p113 = por %p111, %p112
      %p114 = scmp.ne.s32.totalorder %s106, %s108
      %p115 = scmp.eq.s32.totalorder %s33, 8
      %p116 = por %p114, %p115
      %p117 = scmp.ne.s32.totalorder %s108, %s109
      %p118 = scmp.eq.s32.totalorder %s33, 0
      %p119 = por %p117, %p118
      %p120 = scmp.ne.s32.totalorder %s108, %s109
      %p121 = scmp.eq.s32.totalorder %s34, 8
      %p122 = por %p120, %p121
      %p124 = scmp.ne.s32.totalorder %s109, %s123
      %p125 = scmp.eq.s32.totalorder %s34, 0
      %p126 = por %p124, %p125
      %s128 = sadd.s32 %s127, 1
      %p131 = scmp.eq.s32.totalorder %s28, 8
      %p132 = scmp.ne.s32.totalorder %s127, %s129
      %p133 = scmp.eq.s32.totalorder %s28, 0
      %p134 = por %p132, %p133
      %p135 = scmp.ne.s32.totalorder %s127, %s129
      %p136 = scmp.eq.s32.totalorder %s33, 8
      %p137 = por %p135, %p136
      %p138 = scmp.ne.s32.totalorder %s129, %s130
      %p139 = scmp.eq.s32.totalorder %s33, 0
      %p140 = por %p138, %p139
      %p141 = scmp.ne.s32.totalorder %s129, %s130
      %p142 = scmp.eq.s32.totalorder %s34, 8
      %p143 = por %p141, %p142
      %p145 = scmp.ne.s32.totalorder %s130, %s144
      %p146 = scmp.eq.s32.totalorder %s34, 0
      %p147 = por %p145, %p146
      %s149 = sadd.s32 %s148, 1
      %p152 = scmp.eq.s32.totalorder %s28, 8
      %p153 = scmp.ne.s32.totalorder %s148, %s150
      %p154 = scmp.eq.s32.totalorder %s28, 0
      %p155 = por %p153, %p154
      %p156 = scmp.ne.s32.totalorder %s148, %s150
      %p157 = scmp.eq.s32.totalorder %s33, 8
      %p158 = por %p156, %p157
      %p159 = scmp.ne.s32.totalorder %s150, %s151
      %p160 = scmp.eq.s32.totalorder %s33, 0
      %p161 = por %p159, %p160
      %p162 = scmp.ne.s32.totalorder %s150, %s151
      %p163 = scmp.eq.s32.totalorder %s34, 8
      %p164 = por %p162, %p163
      %p166 = scmp.ne.s32.totalorder %s151, %s165
      %p167 = scmp.eq.s32.totalorder %s34, 0
      %p168 = por %p166, %p167
      %s170 = sadd.s32 %s169, 1
      %p173 = scmp.eq.s32.totalorder %s28, 8
      %p174 = scmp.ne.s32.totalorder %s169, %s171
      %p175 = scmp.eq.s32.totalorder %s28, 0
      %p176 = por %p174, %p175
      %p177 = scmp.ne.s32.totalorder %s169, %s171
      %p178 = scmp.eq.s32.totalorder %s33, 8
      %p179 = por %p177, %p178
      %p180 = scmp.ne.s32.totalorder %s171, %s172
      %p181 = scmp.eq.s32.totalorder %s33, 0
      %p182 = por %p180, %p181
      %p183 = scmp.ne.s32.totalorder %s171, %s172
      %p184 = scmp.eq.s32.totalorder %s34, 8
      %p185 = por %p183, %p184
      %p187 = scmp.ne.s32.totalorder %s172, %s186
      %p188 = scmp.eq.s32.totalorder %s34, 0
      %p189 = por %p187, %p188
      %s191 = sadd.s32 %s190, 1
      %p194 = scmp.eq.s32.totalorder %s28, 8
      %p195 = scmp.ne.s32.totalorder %s190, %s192
      %p196 = scmp.eq.s32.totalorder %s28, 0
      %p197 = por %p195, %p196
      %p198 = scmp.ne.s32.totalorder %s190, %s192
      %p199 = scmp.eq.s32.totalorder %s33, 8
      %p200 = por %p198, %p199
      %p201 = scmp.ne.s32.totalorder %s192, %s193
      %p202 = scmp.eq.s32.totalorder %s33, 0
      %p203 = por %p201, %p202
      %p204 = scmp.ne.s32.totalorder %s192, %s193
      %p205 = scmp.eq.s32.totalorder %s34, 8
      %p206 = por %p204, %p205
      %p208 = scmp.ne.s32.totalorder %s193, %s207
      %p209 = scmp.eq.s32.totalorder %s34, 0
      %p210 = por %p208, %p209
      %s211 = ssub.s32 %s36, %s50
      %p212 = scmp.eq.s32.totalorder %s211, 0
      %s214 = sadd.s32 %s213, 1
      %s215 = scalar_select %p212, %s213, %s214
      %p218 = pneg %p212
      %p219 = scmp.eq.s32.totalorder %s28, 8
      %p220 = por %p218, %p219
      %p221 = scmp.ne.s32.totalorder %s213, %s216
      %p222 = scmp.eq.s32.totalorder %s28, 0
      %p223 = por %p221, %p222
      %p224 = scmp.ne.s32.totalorder %s213, %s216
      %p225 = scmp.eq.s32.totalorder %s33, 8
      %p226 = por %p224, %p225
      %p227 = scmp.ne.s32.totalorder %s216, %s217
      %p228 = scmp.eq.s32.totalorder %s33, 0
      %p229 = por %p227, %p228
      %p230 = scmp.ne.s32.totalorder %s216, %s217
      %p231 = scmp.eq.s32.totalorder %s34, 8
      %p232 = por %p230, %p231
      %p234 = scmp.ne.s32.totalorder %s217, %s233
      %p235 = scmp.eq.s32.totalorder %s34, 0
      %p236 = por %p234, %p235
      %s238 = sadd.s32 %s237, 1
      %p241 = scmp.eq.s32.totalorder %s28, 8
      %p242 = scmp.ne.s32.totalorder %s237, %s239
      %p243 = scmp.eq.s32.totalorder %s28, 0
      %p244 = por %p242, %p243
      %p245 = scmp.ne.s32.totalorder %s237, %s239
      %p246 = scmp.eq.s32.totalorder %s33, 8
      %p247 = por %p245, %p246
      %p248 = scmp.ne.s32.totalorder %s239, %s240
      %p249 = scmp.eq.s32.totalorder %s33, 0
      %p250 = por %p248, %p249
      %p251 = scmp.ne.s32.totalorder %s239, %s240
      %p252 = scmp.eq.s32.totalorder %s34, 8
      %p253 = por %p251, %p252
      %p255 = scmp.ne.s32.totalorder %s240, %s254
      %p256 = scmp.eq.s32.totalorder %s34, 0
      %p257 = por %p255, %p256
      %s259 = sadd.s32 %s258, 1
      %p262 = scmp.eq.s32.totalorder %s28, 8
      %p263 = scmp.ne.s32.totalorder %s258, %s260
      %p264 = scmp.eq.s32.totalorder %s28, 0
      %p265 = por %p263, %p264
      %p266 = scmp.ne.s32.totalorder %s258, %s260
      %p267 = scmp.eq.s32.totalorder %s33, 8
      %p268 = por %p266, %p267
      %p269 = scmp.ne.s32.totalorder %s260, %s261
      %p270 = scmp.eq.s32.totalorder %s33, 0
      %p271 = por %p269, %p270
      %p272 = scmp.ne.s32.totalorder %s260, %s261
      %p273 = scmp.eq.s32.totalorder %s34, 8
      %p274 = por %p272, %p273
      %p276 = scmp.ne.s32.totalorder %s261, %s275
      %p277 = scmp.eq.s32.totalorder %s34, 0
      %p278 = por %p276, %p277
      %s280 = sadd.s32 %s279, 1
      %p283 = scmp.eq.s32.totalorder %s28, 8
      %p284 = scmp.ne.s32.totalorder %s279, %s281
      %p285 = scmp.eq.s32.totalorder %s28, 0
      %p286 = por %p284, %p285
      %p287 = scmp.ne.s32.totalorder %s279, %s281
      %p288 = scmp.eq.s32.totalorder %s33, 8
      %p289 = por %p287, %p288
      %p290 = scmp.ne.s32.totalorder %s281, %s282
      %p291 = scmp.eq.s32.totalorder %s33, 0
      %p292 = por %p290, %p291
      %p293 = scmp.ne.s32.totalorder %s281, %s282
      %p294 = scmp.eq.s32.totalorder %s34, 8
      %p295 = por %p293, %p294
      %p297 = scmp.ne.s32.totalorder %s282, %s296
      %p298 = scmp.eq.s32.totalorder %s34, 0
      %p299 = por %p297, %p298
      %s301 = sadd.s32 %s300, 1
      %p304 = scmp.eq.s32.totalorder %s28, 8
      %p305 = scmp.ne.s32.totalorder %s300, %s302
      %p306 = scmp.eq.s32.totalorder %s28, 0
      %p307 = por %p305, %p306
      %p308 = scmp.ne.s32.totalorder %s300, %s302
      %p309 = scmp.eq.s32.totalorder %s33, 8
      %p310 = por %p308, %p309
      %p311 = scmp.ne.s32.totalorder %s302, %s303
      %p312 = scmp.eq.s32.totalorder %s33, 0
      %p313 = por %p311, %p312
      %p314 = scmp.ne.s32.totalorder %s302, %s303
      %p315 = scmp.eq.s32.totalorder %s34, 8
      %p316 = por %p314, %p315
      %p318 = scmp.ne.s32.totalorder %s303, %s317
      %p319 = scmp.eq.s32.totalorder %s34, 0
      %p320 = por %p318, %p319
      %s322 = sadd.s32 %s321, 1
      %p325 = scmp.eq.s32.totalorder %s28, 8
      %p326 = scmp.ne.s32.totalorder %s321, %s323
      %p327 = scmp.eq.s32.totalorder %s28, 0
      %p328 = por %p326, %p327
      %p329 = scmp.ne.s32.totalorder %s321, %s323
      %p330 = scmp.eq.s32.totalorder %s33, 8
      %p331 = por %p329, %p330
      %p332 = scmp.ne.s32.totalorder %s323, %s324
      %p333 = scmp.eq.s32.totalorder %s33, 0
      %p334 = por %p332, %p333
      %p335 = scmp.ne.s32.totalorder %s323, %s324
      %p336 = scmp.eq.s32.totalorder %s34, 8
      %p337 = por %p335, %p336
      %p339 = scmp.ne.s32.totalorder %s324, %s338
      %p340 = scmp.eq.s32.totalorder %s34, 0
      %p341 = por %p339, %p340
      %s343 = sadd.s32 %s342, 1
      %p346 = scmp.eq.s32.totalorder %s28, 8
      %p347 = scmp.ne.s32.totalorder %s342, %s344
      %p348 = scmp.eq.s32.totalorder %s28, 0
      %p349 = por %p347, %p348
      %p350 = scmp.ne.s32.totalorder %s342, %s344
      %p351 = scmp.eq.s32.totalorder %s33, 8
      %p352 = por %p350, %p351
      %p353 = scmp.ne.s32.totalorder %s344, %s345
      %p354 = scmp.eq.s32.totalorder %s33, 0
      %p355 = por %p353, %p354
      %p356 = scmp.ne.s32.totalorder %s344, %s345
      %p357 = scmp.eq.s32.totalorder %s34, 8
      %p358 = por %p356, %p357
      %p360 = scmp.ne.s32.totalorder %s345, %s359
      %p361 = scmp.eq.s32.totalorder %s34, 0
      %p362 = por %p360, %p361
      %s364 = sadd.s32 %s363, 1
      %p367 = scmp.eq.s32.totalorder %s28, 8
      %p368 = scmp.ne.s32.totalorder %s363, %s365
      %p369 = scmp.eq.s32.totalorder %s28, 0
      %p370 = por %p368, %p369
      %p371 = scmp.ne.s32.totalorder %s363, %s365
      %p372 = scmp.eq.s32.totalorder %s33, 8
      %p373 = por %p371, %p372
      %p374 = scmp.ne.s32.totalorder %s365, %s366
      %p375 = scmp.eq.s32.totalorder %s33, 0
      %p376 = por %p374, %p375
      %p377 = scmp.ne.s32.totalorder %s365, %s366
      %p378 = scmp.eq.s32.totalorder %s34, 8
      %p379 = por %p377, %p378
      %p381 = scmp.ne.s32.totalorder %s366, %s380
      %p382 = scmp.eq.s32.totalorder %s34, 0
      %p383 = por %p381, %p382
      %s384 = ssub.s32 %s35, %s54
      %p385 = scmp.eq.s32.totalorder %s384, 0
      %s387 = sadd.s32 %s386, 1
      %s388 = scalar_select %p385, %s386, %s387
      %p391 = pneg %p385
      %p392 = scmp.eq.s32.totalorder %s28, 8
      %p393 = por %p391, %p392
      %p394 = scmp.ne.s32.totalorder %s386, %s389
      %p395 = scmp.eq.s32.totalorder %s28, 0
      %p396 = por %p394, %p395
      %p397 = scmp.ne.s32.totalorder %s386, %s389
      %p398 = scmp.eq.s32.totalorder %s33, 8
      %p399 = por %p397, %p398
      %p400 = scmp.ne.s32.totalorder %s389, %s390
      %p401 = scmp.eq.s32.totalorder %s33, 0
      %p402 = por %p400, %p401
      %p403 = scmp.ne.s32.totalorder %s389, %s390
      %p404 = scmp.eq.s32.totalorder %s34, 8
      %p405 = por %p403, %p404
      %p407 = scmp.ne.s32.totalorder %s390, %s406
      %p408 = scmp.eq.s32.totalorder %s34, 0
      %p409 = por %p407, %p408
      %p410 = scmp.le.s32.totalorder 1, %s28
      %p411 = scmp.lt.s32.totalorder %s28, 10
      %p412 = pnand %p410, %p411
      %p413 = pneg %p412
      // Predicated region
      $region9: #{tpu_custom_call.1} parent=5 // pred_check
        _
      $region10: #{tpu_custom_call.1} parent=5 // pred_check_branch
        %415 = sbr.rel (%p412) target = $region12
      $region11: #{tpu_custom_call.1} parent=5 // pred_region
        %s416 = ssub.s32 %s28, 1
        // Predicated region
        $region13: #{tpu_custom_call.1} parent=11 // pred_check
          %p417 = pneg %p98
        $region14: #{tpu_custom_call.1} parent=11 // pred_check_branch
          %419 = sbr.rel (%p417) target = $region16
        $region15: #{tpu_custom_call.1} parent=11 // pred_region
          %421 = vsyncadd [#allocation5], 0
          %s423 = sshll.u32 %s1, 4
          %s424 = int_to_ptr.hbm [resolvable:$true] %s423
          %s425 = sshll.u32 [#allocation4], 4
          %s426 = int_to_ptr.vmem [resolvable:$true] %s425
          %428 = dma.hbm_to_vmem [thread:$0]  %s424, 32, %s426, [#allocation5]
        $region16: #{tpu_custom_call.1} parent=11 // pred_fallthru
          _
        // Predicated region
        $region17: #{tpu_custom_call.1} parent=11 // pred_check
          %p429 = pneg %p119
        $region18: #{tpu_custom_call.1} parent=11 // pred_check_branch
          %431 = sbr.rel (%p429) target = $region20
        $region19: #{tpu_custom_call.1} parent=11 // pred_region
          %433 = vsyncadd [#allocation8], 0
          %s435 = sshll.u32 %s2, 4
          %s436 = int_to_ptr.hbm [resolvable:$true] %s435
          %s437 = sshll.u32 [#allocation7], 4
          %s438 = int_to_ptr.vmem [resolvable:$true] %s437
          %440 = dma.hbm_to_vmem [thread:$0]  %s436, 16, %s438, [#allocation8]
        $region20: #{tpu_custom_call.1} parent=11 // pred_fallthru
          _
        // Predicated region
        $region21: #{tpu_custom_call.1} parent=11 // pred_check
          %p441 = pneg %p140
        $region22: #{tpu_custom_call.1} parent=11 // pred_check_branch
          %443 = sbr.rel (%p441) target = $region24
        $region23: #{tpu_custom_call.1} parent=11 // pred_region
          %445 = vsyncadd [#allocation8], 0
          %s446 = sshll.u32 %s3, 4
          %s447 = int_to_ptr.hbm [resolvable:$true] %s446
          %s448 = sshll.u32 [#allocation9], 4
          %s449 = int_to_ptr.vmem [resolvable:$true] %s448
          %454 = dma.hbm_to_vmem [thread:$0]  %s447, 1024, %s449, [#allocation8], 64, 64, 4
        $region24: #{tpu_custom_call.1} parent=11 // pred_fallthru
          _
        // Predicated region
        $region25: #{tpu_custom_call.1} parent=11 // pred_check
          %p455 = pneg %p161
        $region26: #{tpu_custom_call.1} parent=11 // pred_check_branch
          %457 = sbr.rel (%p455) target = $region28
        $region27: #{tpu_custom_call.1} parent=11 // pred_region
          %459 = vsyncadd [#allocation11], 0
          %s461 = sshll.u32 %s4, 4
          %s462 = int_to_ptr.hbm [resolvable:$true] %s461
          %s463 = sshll.u32 [#allocation10], 4
          %s464 = int_to_ptr.vmem [resolvable:$true] %s463
          %466 = dma.hbm_to_vmem [thread:$0]  %s462, 16, %s464, [#allocation11]
        $region28: #{tpu_custom_call.1} parent=11 // pred_fallthru
          _
        // Predicated region
        $region29: #{tpu_custom_call.1} parent=11 // pred_check
          %p467 = pneg %p182
        $region30: #{tpu_custom_call.1} parent=11 // pred_check_branch
          %469 = sbr.rel (%p467) target = $region32
        $region31: #{tpu_custom_call.1} parent=11 // pred_region
          %471 = vsyncadd [#allocation11], 0
          %s472 = sshll.u32 %s5, 4
          %s473 = int_to_ptr.hbm [resolvable:$true] %s472
          %s474 = sshll.u32 [#allocation12], 4
          %s475 = int_to_ptr.vmem [resolvable:$true] %s474
          %480 = dma.hbm_to_vmem [thread:$0]  %s473, 1024, %s475, [#allocation11], 64, 64, 4
        $region32: #{tpu_custom_call.1} parent=11 // pred_fallthru
          _
        // Predicated region
        $region33: #{tpu_custom_call.1} parent=11 // pred_check
          %p481 = pneg %p203
        $region34: #{tpu_custom_call.1} parent=11 // pred_check_branch
          %483 = sbr.rel (%p481) target = $region36
        $region35: #{tpu_custom_call.1} parent=11 // pred_region
          %485 = vsyncadd [#allocation14], 0
          %s487 = sshll.u32 %s6, 4
          %s488 = int_to_ptr.hbm [resolvable:$true] %s487
          %s489 = sshll.u32 [#allocation13], 4
          %s490 = int_to_ptr.vmem [resolvable:$true] %s489
          %492 = dma.hbm_to_vmem [thread:$0]  %s488, 16, %s490, [#allocation14]
        $region36: #{tpu_custom_call.1} parent=11 // pred_fallthru
          _
        // Predicated region
        $region37: #{tpu_custom_call.1} parent=11 // pred_check
          %p493 = pneg %p250
        $region38: #{tpu_custom_call.1} parent=11 // pred_check_branch
          %495 = sbr.rel (%p493) target = $region40
        $region39: #{tpu_custom_call.1} parent=11 // pred_region
          %497 = vsyncadd [#allocation8], 0
          %s499 = sshll.u32 %s8, 4
          %s500 = int_to_ptr.hbm [resolvable:$true] %s499
          %s501 = sshll.u32 [#allocation16], 4
          %s502 = int_to_ptr.vmem [resolvable:$true] %s501
          %504 = dma.hbm_to_vmem [thread:$0]  %s500, 128, %s502, [#allocation8]
        $region40: #{tpu_custom_call.1} parent=11 // pred_fallthru
          _
        // Predicated region
        $region41: #{tpu_custom_call.1} parent=11 // pred_check
          %p505 = pneg %p271
        $region42: #{tpu_custom_call.1} parent=11 // pred_check_branch
          %507 = sbr.rel (%p505) target = $region44
        $region43: #{tpu_custom_call.1} parent=11 // pred_region
          %509 = vsyncadd [#allocation11], 0
          %s510 = sshll.u32 %s9, 4
          %s511 = int_to_ptr.hbm [resolvable:$true] %s510
          %s512 = sshll.u32 [#allocation17], 4
          %s513 = int_to_ptr.vmem [resolvable:$true] %s512
          %518 = dma.hbm_to_vmem [thread:$0]  %s511, 8192, %s513, [#allocation11], 128, 128, 8
        $region44: #{tpu_custom_call.1} parent=11 // pred_fallthru
          _
        // Predicated region
        $region45: #{tpu_custom_call.1} parent=11 // pred_check
          %p519 = pneg %p292
        $region46: #{tpu_custom_call.1} parent=11 // pred_check_branch
          %521 = sbr.rel (%p519) target = $region48
        $region47: #{tpu_custom_call.1} parent=11 // pred_region
          %523 = vsyncadd [#allocation14], 0
          %s525 = sshll.u32 %s10, 4
          %s526 = int_to_ptr.hbm [resolvable:$true] %s525
          %s527 = sshll.u32 [#allocation18], 4
          %s528 = int_to_ptr.vmem [resolvable:$true] %s527
          %530 = dma.hbm_to_vmem [thread:$0]  %s526, 32, %s528, [#allocation14]
        $region48: #{tpu_custom_call.1} parent=11 // pred_fallthru
          _
        // Predicated region
        $region49: #{tpu_custom_call.1} parent=11 // pred_check
          %p531 = pneg %p313
        $region50: #{tpu_custom_call.1} parent=11 // pred_check_branch
          %533 = sbr.rel (%p531) target = $region52
        $region51: #{tpu_custom_call.1} parent=11 // pred_region
          %535 = vsyncadd [#allocation20], 0
          %s536 = sshll.u32 %s11, 4
          %s537 = int_to_ptr.hbm [resolvable:$true] %s536
          %s538 = sshll.u32 [#allocation19], 4
          %s539 = int_to_ptr.vmem [resolvable:$true] %s538
          %544 = dma.hbm_to_vmem [thread:$0]  %s537, 8192, %s539, [#allocation20], 128, 128, 8
        $region52: #{tpu_custom_call.1} parent=11 // pred_fallthru
          _
        // Predicated region
        $region53: #{tpu_custom_call.1} parent=11 // pred_check
          %p545 = pneg %p334
        $region54: #{tpu_custom_call.1} parent=11 // pred_check_branch
          %547 = sbr.rel (%p545) target = $region56
        $region55: #{tpu_custom_call.1} parent=11 // pred_region
          %549 = vsyncadd [#allocation20], 0
          %s551 = sshll.u32 %s12, 4
          %s552 = int_to_ptr.hbm [resolvable:$true] %s551
          %s553 = sshll.u32 [#allocation21], 4
          %s554 = int_to_ptr.vmem [resolvable:$true] %s553
          %556 = dma.hbm_to_vmem [thread:$0]  %s552, 32, %s554, [#allocation20]
        $region56: #{tpu_custom_call.1} parent=11 // pred_fallthru
          _
        // Predicated region
        $region57: #{tpu_custom_call.1} parent=11 // pred_check
          %p557 = pneg %p355
        $region58: #{tpu_custom_call.1} parent=11 // pred_check_branch
          %559 = sbr.rel (%p557) target = $region60
        $region59: #{tpu_custom_call.1} parent=11 // pred_region
          %561 = vsyncadd [#allocation23], 0
          %s562 = sshll.u32 %s13, 4
          %s563 = int_to_ptr.hbm [resolvable:$true] %s562
          %s564 = sshll.u32 [#allocation22], 4
          %s565 = int_to_ptr.vmem [resolvable:$true] %s564
          %570 = dma.hbm_to_vmem [thread:$0]  %s563, 4096, %s565, [#allocation23], 64, 64, 4
        $region60: #{tpu_custom_call.1} parent=11 // pred_fallthru
          _
        // Predicated region
        $region61: #{tpu_custom_call.1} parent=11 // pred_check
          %p571 = pneg %p376
        $region62: #{tpu_custom_call.1} parent=11 // pred_check_branch
          %573 = sbr.rel (%p571) target = $region64
        $region63: #{tpu_custom_call.1} parent=11 // pred_region
          %575 = vsyncadd [#allocation23], 0
          %s577 = sshll.u32 %s14, 4
          %s578 = int_to_ptr.hbm [resolvable:$true] %s577
          %s579 = sshll.u32 [#allocation24], 4
          %s580 = int_to_ptr.vmem [resolvable:$true] %s579
          %582 = dma.hbm_to_vmem [thread:$0]  %s578, 16, %s580, [#allocation23]
        $region64: #{tpu_custom_call.1} parent=11 // pred_fallthru
          _
      $region12: #{tpu_custom_call.1} parent=5 // pred_fallthru
        _
      %p583 = scmp.lt.s32.totalorder %s28, 9
      // Predicated region
      $region65: #{tpu_custom_call.1} parent=5 // pred_check
        %p584 = pneg %p583
      $region66: #{tpu_custom_call.1} parent=5 // pred_check_branch
        %586 = sbr.rel (%p584) target = $region68
      $region67: #{tpu_custom_call.1} parent=5 // pred_region
        // Predicated region
        $region69: #{tpu_custom_call.1} parent=67 // pred_check
          %p587 = pneg %p71
        $region70: #{tpu_custom_call.1} parent=67 // pred_check_branch
          %589 = sbr.rel (%p587) target = $region72
        $region71: #{tpu_custom_call.1} parent=67 // pred_region
          %s590 = smul.u32 2, %s37
          %p591 = scmp.lt.s32.totalorder %s36, 8
          %s592 = scalar_select %p591, %s36, 8
          %p593 = scmp.lt.s32.totalorder %s35, 0
          %s594 = scalar_select %p593, %s35, 0
          %p595 = scmp.lt.s32.totalorder %s590, 1
          %s596 = scalar_select %p595, %s590, 1
          %s597 = smul.addr %s594, 2
          %s598 = sadd.s32 %s596, %s597
          %s599 = smul.addr %s592, 2
          %s600 = sadd.s32 %s598, %s599
          %s601 = smul.addr %s600, 8
          %s602 = scalar_lea.vmem %s0, %s601
          %s603 = smul.u32 2, %s37
        $region72: #{tpu_custom_call.1} parent=67 // pred_fallthru
          _
        // Predicated region
        $region73: #{tpu_custom_call.1} parent=67 // pred_check
          %p604 = pneg %p223
        $region74: #{tpu_custom_call.1} parent=67 // pred_check_branch
          %606 = sbr.rel (%p604) target = $region76
        $region75: #{tpu_custom_call.1} parent=67 // pred_region
          %s607 = sand.u32 %s28, 1
          %s608 = scalar_lea.sflag [#allocation5], %s607
          %s609 = sand.u32 %s213, 1
          %s610 = smul.addr %s609, 512
          %s611 = scalar_lea.vmem [#allocation15], %s610
          %s612 = smul.u32 16, %s36
          %614 = vsyncadd %s608, 0
          %s615 = smul.addr %s612, 8
          %s616 = smul.addr %s615, 4
          %s617 = scalar_lea.hbm %s7, %s616
          %s618 = sshll.u32 %s617, 4
          %s619 = int_to_ptr.hbm [resolvable:$true] %s618
          %s620 = sshll.u32 %s611, 4
          %s621 = int_to_ptr.vmem [resolvable:$true] %s620
          %626 = dma.hbm_to_vmem [thread:$0]  %s619, 8192, %s621, %s608, 512, 512, 32
        $region76: #{tpu_custom_call.1} parent=67 // pred_fallthru
          _
      $region68: #{tpu_custom_call.1} parent=5 // pred_fallthru
        _
      %p627 = scmp.le.s32.totalorder 1, %s28
      %p628 = scmp.lt.s32.totalorder %s28, 10
      %p629 = pnand %p627, %p628
      %p630 = pneg %p629
      // Predicated region
      $region77: #{tpu_custom_call.1} parent=5 // pred_check
        _
      $region78: #{tpu_custom_call.1} parent=5 // pred_check_branch
        %632 = sbr.rel (%p629) target = $region80
      $region79: #{tpu_custom_call.1} parent=5 // pred_region
        %s633 = ssub.s32 %s28, 1
        // Predicated region
        $region81: #{tpu_custom_call.1} parent=79 // pred_check
          %p634 = pneg %p98
        $region82: #{tpu_custom_call.1} parent=79 // pred_check_branch
          %636 = sbr.rel (%p634) target = $region84
        $region83: #{tpu_custom_call.1} parent=79 // pred_region
          %638 = dma.done [#allocation5], 32
        $region84: #{tpu_custom_call.1} parent=79 // pred_fallthru
          _
        // Predicated region
        $region85: #{tpu_custom_call.1} parent=79 // pred_check
          %p639 = pneg %p119
        $region86: #{tpu_custom_call.1} parent=79 // pred_check_branch
          %641 = sbr.rel (%p639) target = $region88
        $region87: #{tpu_custom_call.1} parent=79 // pred_region
          %643 = dma.done [#allocation8], 16
        $region88: #{tpu_custom_call.1} parent=79 // pred_fallthru
          _
        // Predicated region
        $region89: #{tpu_custom_call.1} parent=79 // pred_check
          %p644 = pneg %p140
        $region90: #{tpu_custom_call.1} parent=79 // pred_check_branch
          %646 = sbr.rel (%p644) target = $region92
        $region91: #{tpu_custom_call.1} parent=79 // pred_region
          %648 = dma.done [#allocation8], 1024
        $region92: #{tpu_custom_call.1} parent=79 // pred_fallthru
          _
        // Predicated region
        $region93: #{tpu_custom_call.1} parent=79 // pred_check
          %p649 = pneg %p161
        $region94: #{tpu_custom_call.1} parent=79 // pred_check_branch
          %651 = sbr.rel (%p649) target = $region96
        $region95: #{tpu_custom_call.1} parent=79 // pred_region
          %653 = dma.done [#allocation11], 16
        $region96: #{tpu_custom_call.1} parent=79 // pred_fallthru
          _
        // Predicated region
        $region97: #{tpu_custom_call.1} parent=79 // pred_check
          %p654 = pneg %p182
        $region98: #{tpu_custom_call.1} parent=79 // pred_check_branch
          %656 = sbr.rel (%p654) target = $region100
        $region99: #{tpu_custom_call.1} parent=79 // pred_region
          %658 = dma.done [#allocation11], 1024
        $region100: #{tpu_custom_call.1} parent=79 // pred_fallthru
          _
        // Predicated region
        $region101: #{tpu_custom_call.1} parent=79 // pred_check
          %p659 = pneg %p203
        $region102: #{tpu_custom_call.1} parent=79 // pred_check_branch
          %661 = sbr.rel (%p659) target = $region104
        $region103: #{tpu_custom_call.1} parent=79 // pred_region
          %663 = dma.done [#allocation14], 16
        $region104: #{tpu_custom_call.1} parent=79 // pred_fallthru
          _
        %s664 = sand.u32 %s33, 1
        %s665 = scalar_lea.sflag [#allocation5], %s664
        %s666 = sand.u32 %s216, 1
        %s667 = smul.addr %s666, 512
        %s668 = scalar_lea.vmem [#allocation15], %s667
        // Predicated region
        $region105: #{tpu_custom_call.1} parent=79 // pred_check
          %p669 = pneg %p229
        $region106: #{tpu_custom_call.1} parent=79 // pred_check_branch
          %671 = sbr.rel (%p669) target = $region108
        $region107: #{tpu_custom_call.1} parent=79 // pred_region
          %673 = dma.done %s665, 8192
        $region108: #{tpu_custom_call.1} parent=79 // pred_fallthru
          _
        // Predicated region
        $region109: #{tpu_custom_call.1} parent=79 // pred_check
          %p674 = pneg %p250
        $region110: #{tpu_custom_call.1} parent=79 // pred_check_branch
          %676 = sbr.rel (%p674) target = $region112
        $region111: #{tpu_custom_call.1} parent=79 // pred_region
          %678 = dma.done [#allocation8], 128
        $region112: #{tpu_custom_call.1} parent=79 // pred_fallthru
          _
        // Predicated region
        $region113: #{tpu_custom_call.1} parent=79 // pred_check
          %p679 = pneg %p271
        $region114: #{tpu_custom_call.1} parent=79 // pred_check_branch
          %681 = sbr.rel (%p679) target = $region116
        $region115: #{tpu_custom_call.1} parent=79 // pred_region
          %683 = dma.done [#allocation11], 8192
        $region116: #{tpu_custom_call.1} parent=79 // pred_fallthru
          _
        // Predicated region
        $region117: #{tpu_custom_call.1} parent=79 // pred_check
          %p684 = pneg %p292
        $region118: #{tpu_custom_call.1} parent=79 // pred_check_branch
          %686 = sbr.rel (%p684) target = $region120
        $region119: #{tpu_custom_call.1} parent=79 // pred_region
          %688 = dma.done [#allocation14], 32
        $region120: #{tpu_custom_call.1} parent=79 // pred_fallthru
          _
        // Predicated region
        $region121: #{tpu_custom_call.1} parent=79 // pred_check
          %p689 = pneg %p313
        $region122: #{tpu_custom_call.1} parent=79 // pred_check_branch
          %691 = sbr.rel (%p689) target = $region124
        $region123: #{tpu_custom_call.1} parent=79 // pred_region
          %693 = dma.done [#allocation20], 8192
        $region124: #{tpu_custom_call.1} parent=79 // pred_fallthru
          _
        // Predicated region
        $region125: #{tpu_custom_call.1} parent=79 // pred_check
          %p694 = pneg %p334
        $region126: #{tpu_custom_call.1} parent=79 // pred_check_branch
          %696 = sbr.rel (%p694) target = $region128
        $region127: #{tpu_custom_call.1} parent=79 // pred_region
          %698 = dma.done [#allocation20], 32
        $region128: #{tpu_custom_call.1} parent=79 // pred_fallthru
          _
        // Predicated region
        $region129: #{tpu_custom_call.1} parent=79 // pred_check
          %p699 = pneg %p355
        $region130: #{tpu_custom_call.1} parent=79 // pred_check_branch
          %701 = sbr.rel (%p699) target = $region132
        $region131: #{tpu_custom_call.1} parent=79 // pred_region
          %703 = dma.done [#allocation23], 4096
        $region132: #{tpu_custom_call.1} parent=79 // pred_fallthru
          _
        // Predicated region
        $region133: #{tpu_custom_call.1} parent=79 // pred_check
          %p704 = pneg %p376
        $region134: #{tpu_custom_call.1} parent=79 // pred_check_branch
          %706 = sbr.rel (%p704) target = $region136
        $region135: #{tpu_custom_call.1} parent=79 // pred_region
          %708 = dma.done [#allocation23], 16
        $region136: #{tpu_custom_call.1} parent=79 // pred_fallthru
          _
        %s709 = smul.u32 2, %s40
        %p710 = scmp.lt.s32.totalorder %s39, 8
        %s711 = scalar_select %p710, %s39, 8
        %p712 = scmp.lt.s32.totalorder %s38, 0
        %s713 = scalar_select %p712, %s38, 0
        %p714 = scmp.lt.s32.totalorder %s709, 1
        %s715 = scalar_select %p714, %s709, 1
        %s716 = smul.addr %s713, 2
        %s717 = sadd.s32 %s715, %s716
        %s718 = smul.addr %s711, 2
        %s719 = sadd.s32 %s717, %s718
        %s720 = smul.addr %s719, 8
        %s721 = scalar_lea.vmem %s0, %s720
        %p722 = pneg %p77
        %p723 = pneg %p74
        %p724 = pneg %p98
        %p725 = pneg %p95
        %p726 = pneg %p119
        %p727 = pneg %p116
        %p728 = pneg %p140
        %p729 = pneg %p137
        %p730 = pneg %p161
        %p731 = pneg %p158
        %p732 = pneg %p182
        %p733 = pneg %p179
        %p734 = pneg %p203
        %p735 = pneg %p200
        %s736 = sand.u32 %s33, 1
        %s737 = scalar_lea.sflag [#allocation5], %s736
        %s738 = sand.u32 %s216, 1
        %s739 = smul.addr %s738, 512
        %s740 = scalar_lea.vmem [#allocation15], %s739
        %p741 = pneg %p229
        %p742 = pneg %p226
        %p743 = pneg %p250
        %p744 = pneg %p247
        %p745 = pneg %p271
        %p746 = pneg %p268
        %p747 = pneg %p292
        %p748 = pneg %p289
        %p749 = pneg %p313
        %p750 = pneg %p310
        %p751 = pneg %p334
        %p752 = pneg %p331
        %p753 = pneg %p355
        %p754 = pneg %p352
        %p755 = pneg %p376
        %p756 = pneg %p373
        %p757 = pneg %p402
        %p758 = pneg %p399
        %s759 = smul.u32 2, %s40
        %p760 = scmp.lt.s32.totalorder %s39, 8
        %s761 = scalar_select %p760, %s39, 8
        %p762 = scmp.lt.s32.totalorder %s38, 0
        %s763 = scalar_select %p762, %s38, 0
        %p764 = scmp.lt.s32.totalorder %s759, 1
        %s765 = scalar_select %p764, %s759, 1
        %s766 = smul.addr %s763, 2
        %s767 = sadd.s32 %s765, %s766
        %s768 = smul.addr %s761, 2
        %s769 = sadd.s32 %s767, %s768
        %s770 = smul.addr %s769, 8
        %s771 = scalar_lea.vmem %s0, %s770
        %s772 = smul.u32 2, %s40
        %s773 = smul.u32 16, %s39
        %v775 = vld [vmem:[%s771] sm:$0xff]
        %v776 = vld [vmem:[%s771 + $0x8] sm:$0xff]
        %v777 = vpack.c.bf16 %v776, %v775
        %v778 = vld [vmem:[#allocation4] sm:$0x3]
        %v779 = vld [vmem:[#allocation7] sm:$0x1]
        %v781 = vperm.slane %v779, 0
        %vm783 = vcmask 31744
        %v785 = vsel %vm783, %v777, 0
        %vm787 = vcmask 1041408
        %v789 = vsel %vm787, %v778, 0
        %791 = vmatpush.bf16.msra.mxu0 0
        %792 = vmatpush.bf16.msra.mxu0 0
        %793 = vmatpush.bf16.msra.mxu0 0
        %794 = vmatpush.bf16.msra.mxu0 0
        %795 = vmatpush.bf16.msra.mxu0 0
        %796 = vmatpush.bf16.msra.mxu0 0
        %797 = vmatpush.bf16.msra.mxu0 0
        %798 = vmatpush.bf16.msra.mxu0 %v789
        %799 = vmatmul.bf16.gmra.mxu0 %v785
        %v800 = vpop.f32.mrf.mxu0
        %v801 = vadd.f32 %v781, %v800
        %v802 = vpop.f32.mrf.mxu0
        %v803 = vadd.f32 %v781, %v802
        %804 = vdwg.mxu0
        %v805 = vmul.f32 %v801, 0.1
        %v806 = vmul.f32 %v803, 0.1
        %v807 = vmax.f32 %v801, %v805
        %v808 = vmax.f32 %v803, %v806
        %v809 = vpack.c.bf16 %v808, %v807
        %v810 = vld [vmem:[#allocation9] sm:$0xf]
        %v811 = vld [vmem:[#allocation9 + $0x4] sm:$0xf]
        %v812 = vld [vmem:[#allocation9 + $0x8] sm:$0xf]
        %v813 = vld [vmem:[#allocation9 + $0xc] sm:$0xf]
        %v814 = vld [vmem:[#allocation9 + $0x10] sm:$0xf]
        %v815 = vld [vmem:[#allocation9 + $0x14] sm:$0xf]
        %v816 = vld [vmem:[#allocation9 + $0x18] sm:$0xf]
        %v817 = vld [vmem:[#allocation9 + $0x1c] sm:$0xf]
        %v818 = vld [vmem:[#allocation9 + $0x20] sm:$0xf]
        %v819 = vld [vmem:[#allocation9 + $0x24] sm:$0xf]
        %v820 = vld [vmem:[#allocation9 + $0x28] sm:$0xf]
        %v821 = vld [vmem:[#allocation9 + $0x2c] sm:$0xf]
        %v822 = vld [vmem:[#allocation9 + $0x30] sm:$0xf]
        %v823 = vld [vmem:[#allocation9 + $0x34] sm:$0xf]
        %v824 = vld [vmem:[#allocation9 + $0x38] sm:$0xf]
        %v825 = vld [vmem:[#allocation9 + $0x3c] sm:$0xf]
        %v826 = vld [vmem:[#allocation10] sm:$0x1]
        %v828 = vperm.slane %v826, 0
        %v846 = vunpack.c.l.b16 %v810
        %v847 = vunpack.c.l.b16 %v811
        %v848 = vunpack.c.l.b16 %v812
        %v849 = vunpack.c.l.b16 %v813
        %v850 = vunpack.c.l.b16 %v814
        %v851 = vunpack.c.l.b16 %v815
        %v852 = vunpack.c.l.b16 %v816
        %v853 = vunpack.c.l.b16 %v817
        %v854 = vunpack.c.l.b16 %v818
        %v855 = vunpack.c.l.b16 %v819
        %v856 = vunpack.c.l.b16 %v820
        %v857 = vunpack.c.l.b16 %v821
        %v858 = vunpack.c.l.b16 %v822
        %v859 = vunpack.c.l.b16 %v823
        %v860 = vunpack.c.l.b16 %v824
        %v861 = vunpack.c.l.b16 %v825
        %v862 = vpack.c.b16 %v847, %v846
        %v863 = vpack.c.b16 %v849, %v848
        %v864 = vpack.c.b16 %v851, %v850
        %v865 = vpack.c.b16 %v853, %v852
        %v866 = vpack.c.b16 %v855, %v854
        %v867 = vpack.c.b16 %v857, %v856
        %v868 = vpack.c.b16 %v859, %v858
        %v869 = vpack.c.b16 %v861, %v860
        %878 = vmatpush.bf16.msra.mxu0 %v869
        %879 = vmatpush.bf16.msra.mxu0 %v868
        %880 = vmatpush.bf16.msra.mxu0 %v867
        %881 = vmatpush.bf16.msra.mxu0 %v866
        %882 = vmatpush.bf16.msra.mxu0 %v865
        %883 = vmatpush.bf16.msra.mxu0 %v864
        %884 = vmatpush.bf16.msra.mxu0 %v863
        %885 = vmatpush.bf16.msra.mxu0 %v862
        %886 = vmatmul.bf16.gmra.mxu0 %v809
        %v887 = vpop.f32.mrf.mxu0
        %v888 = vadd.f32 %v828, %v887
        %v889 = vpop.f32.mrf.mxu0
        %v890 = vadd.f32 %v828, %v889
        %891 = vdwg.mxu0
        %v892 = vmul.f32 %v888, 0.1
        %v893 = vmul.f32 %v890, 0.1
        %v894 = vmax.f32 %v888, %v892
        %v895 = vmax.f32 %v890, %v893
        %v896 = vpack.c.bf16 %v895, %v894
        %v897 = vld [vmem:[#allocation12] sm:$0xf]
        %v898 = vld [vmem:[#allocation12 + $0x4] sm:$0xf]
        %v899 = vld [vmem:[#allocation12 + $0x8] sm:$0xf]
        %v900 = vld [vmem:[#allocation12 + $0xc] sm:$0xf]
        %v901 = vld [vmem:[#allocation12 + $0x10] sm:$0xf]
        %v902 = vld [vmem:[#allocation12 + $0x14] sm:$0xf]
        %v903 = vld [vmem:[#allocation12 + $0x18] sm:$0xf]
        %v904 = vld [vmem:[#allocation12 + $0x1c] sm:$0xf]
        %v905 = vld [vmem:[#allocation12 + $0x20] sm:$0xf]
        %v906 = vld [vmem:[#allocation12 + $0x24] sm:$0xf]
        %v907 = vld [vmem:[#allocation12 + $0x28] sm:$0xf]
        %v908 = vld [vmem:[#allocation12 + $0x2c] sm:$0xf]
        %v909 = vld [vmem:[#allocation12 + $0x30] sm:$0xf]
        %v910 = vld [vmem:[#allocation12 + $0x34] sm:$0xf]
        %v911 = vld [vmem:[#allocation12 + $0x38] sm:$0xf]
        %v912 = vld [vmem:[#allocation12 + $0x3c] sm:$0xf]
        %v913 = vld [vmem:[#allocation13] sm:$0x1]
        %v915 = vperm.slane %v913, 0
        %v933 = vunpack.c.l.b16 %v897
        %v934 = vunpack.c.l.b16 %v898
        %v935 = vunpack.c.l.b16 %v899
        %v936 = vunpack.c.l.b16 %v900
        %v937 = vunpack.c.l.b16 %v901
        %v938 = vunpack.c.l.b16 %v902
        %v939 = vunpack.c.l.b16 %v903
        %v940 = vunpack.c.l.b16 %v904
        %v941 = vunpack.c.l.b16 %v905
        %v942 = vunpack.c.l.b16 %v906
        %v943 = vunpack.c.l.b16 %v907
        %v944 = vunpack.c.l.b16 %v908
        %v945 = vunpack.c.l.b16 %v909
        %v946 = vunpack.c.l.b16 %v910
        %v947 = vunpack.c.l.b16 %v911
        %v948 = vunpack.c.l.b16 %v912
        %v949 = vpack.c.b16 %v934, %v933
        %v950 = vpack.c.b16 %v936, %v935
        %v951 = vpack.c.b16 %v938, %v937
        %v952 = vpack.c.b16 %v940, %v939
        %v953 = vpack.c.b16 %v942, %v941
        %v954 = vpack.c.b16 %v944, %v943
        %v955 = vpack.c.b16 %v946, %v945
        %v956 = vpack.c.b16 %v948, %v947
        %965 = vmatpush.bf16.msra.mxu0 %v956
        %966 = vmatpush.bf16.msra.mxu0 %v955
        %967 = vmatpush.bf16.msra.mxu0 %v954
        %968 = vmatpush.bf16.msra.mxu0 %v953
        %969 = vmatpush.bf16.msra.mxu0 %v952
        %970 = vmatpush.bf16.msra.mxu0 %v951
        %971 = vmatpush.bf16.msra.mxu0 %v950
        %972 = vmatpush.bf16.msra.mxu0 %v949
        %973 = vmatmul.bf16.gmra.mxu0 %v896
        %v974 = vpop.f32.mrf.mxu0
        %v975 = vadd.f32 %v915, %v974
        %v976 = vpop.f32.mrf.mxu0
        %v977 = vadd.f32 %v915, %v976
        %978 = vdwg.mxu0
        %v979 = vmax.f32 %v975, %v977
        %p980 = scmp.eq.s32.totalorder %s40, 0
        // Predicated region
        $region137: #{tpu_custom_call.1} parent=79 // pred_check
          %p981 = pneg %p980
        $region138: #{tpu_custom_call.1} parent=79 // pred_check_branch
          %983 = sbr.rel (%p981) target = $region140
        $region139: #{tpu_custom_call.1} parent=79 // pred_region
          %984 = vst [vmem:[#allocation2] sm:$0xff] %v979
        $region140: #{tpu_custom_call.1} parent=79 // pred_fallthru
          _
        %p985 = scmp.gt.s32.totalorder %s40, 0
        // Predicated region
        $region141: #{tpu_custom_call.1} parent=79 // pred_check
          %p986 = pneg %p985
        $region142: #{tpu_custom_call.1} parent=79 // pred_check_branch
          %988 = sbr.rel (%p986) target = $region144
        $region143: #{tpu_custom_call.1} parent=79 // pred_region
          %v989 = vld [vmem:[#allocation2] sm:$0xff]
          %v990 = vmax.f32 %v989, %v979
          %991 = vst [vmem:[#allocation2] sm:$0xff] %v990
        $region144: #{tpu_custom_call.1} parent=79 // pred_fallthru
          _
        // Predicated region
        $region145: #{tpu_custom_call.1} parent=79 // pred_check
          %p992 = pneg %p980
        $region146: #{tpu_custom_call.1} parent=79 // pred_check_branch
          %994 = sbr.rel (%p992) target = $region148
        $region147: #{tpu_custom_call.1} parent=79 // pred_region
          %v995 = vld [vmem:[#allocation2] sm:$0xff]
          %v996 = vpack.c.bf16 %v995, %v995
          %v997 = vld [vmem:[%s668] sm:$0xff]
          %v998 = vld [vmem:[%s668 + $0x8] sm:$0xff]
          %v999 = vld [vmem:[%s668 + $0x10] sm:$0xff]
          %v1000 = vld [vmem:[%s668 + $0x18] sm:$0xff]
          %v1001 = vld [vmem:[%s668 + $0x20] sm:$0xff]
          %v1002 = vld [vmem:[%s668 + $0x28] sm:$0xff]
          %v1003 = vld [vmem:[%s668 + $0x30] sm:$0xff]
          %v1004 = vld [vmem:[%s668 + $0x38] sm:$0xff]
          %v1005 = vld [vmem:[%s668 + $0x40] sm:$0xff]
          %v1006 = vld [vmem:[%s668 + $0x48] sm:$0xff]
          %v1007 = vld [vmem:[%s668 + $0x50] sm:$0xff]
          %v1008 = vld [vmem:[%s668 + $0x58] sm:$0xff]
          %v1009 = vld [vmem:[%s668 + $0x60] sm:$0xff]
          %v1010 = vld [vmem:[%s668 + $0x68] sm:$0xff]
          %v1011 = vld [vmem:[%s668 + $0x70] sm:$0xff]
          %v1012 = vld [vmem:[%s668 + $0x78] sm:$0xff]
          %v1013 = vld [vmem:[%s668 + $0x80] sm:$0xff]
          %v1014 = vld [vmem:[%s668 + $0x88] sm:$0xff]
          %v1015 = vld [vmem:[%s668 + $0x90] sm:$0xff]
          %v1016 = vld [vmem:[%s668 + $0x98] sm:$0xff]
          %v1017 = vld [vmem:[%s668 + $0xa0] sm:$0xff]
          %v1018 = vld [vmem:[%s668 + $0xa8] sm:$0xff]
          %v1019 = vld [vmem:[%s668 + $0xb0] sm:$0xff]
          %v1020 = vld [vmem:[%s668 + $0xb8] sm:$0xff]
          %v1021 = vld [vmem:[%s668 + $0xc0] sm:$0xff]
          %v1022 = vld [vmem:[%s668 + $0xc8] sm:$0xff]
          %v1023 = vld [vmem:[%s668 + $0xd0] sm:$0xff]
          %v1024 = vld [vmem:[%s668 + $0xd8] sm:$0xff]
          %v1025 = vld [vmem:[%s668 + $0xe0] sm:$0xff]
          %v1026 = vld [vmem:[%s668 + $0xe8] sm:$0xff]
          %v1027 = vld [vmem:[%s668 + $0xf0] sm:$0xff]
          %v1028 = vld [vmem:[%s668 + $0xf8] sm:$0xff]
          %v1029 = vld [vmem:[%s668 + $0x100] sm:$0xff]
          %v1030 = vld [vmem:[%s668 + $0x108] sm:$0xff]
          %v1031 = vld [vmem:[%s668 + $0x110] sm:$0xff]
          %v1032 = vld [vmem:[%s668 + $0x118] sm:$0xff]
          %v1033 = vld [vmem:[%s668 + $0x120] sm:$0xff]
          %v1034 = vld [vmem:[%s668 + $0x128] sm:$0xff]
          %v1035 = vld [vmem:[%s668 + $0x130] sm:$0xff]
          %v1036 = vld [vmem:[%s668 + $0x138] sm:$0xff]
          %v1037 = vld [vmem:[%s668 + $0x140] sm:$0xff]
          %v1038 = vld [vmem:[%s668 + $0x148] sm:$0xff]
          %v1039 = vld [vmem:[%s668 + $0x150] sm:$0xff]
          %v1040 = vld [vmem:[%s668 + $0x158] sm:$0xff]
          %v1041 = vld [vmem:[%s668 + $0x160] sm:$0xff]
          %v1042 = vld [vmem:[%s668 + $0x168] sm:$0xff]
          %v1043 = vld [vmem:[%s668 + $0x170] sm:$0xff]
          %v1044 = vld [vmem:[%s668 + $0x178] sm:$0xff]
          %v1045 = vld [vmem:[%s668 + $0x180] sm:$0xff]
          %v1046 = vld [vmem:[%s668 + $0x188] sm:$0xff]
          %v1047 = vld [vmem:[%s668 + $0x190] sm:$0xff]
          %v1048 = vld [vmem:[%s668 + $0x198] sm:$0xff]
          %v1049 = vld [vmem:[%s668 + $0x1a0] sm:$0xff]
          %v1050 = vld [vmem:[%s668 + $0x1a8] sm:$0xff]
          %v1051 = vld [vmem:[%s668 + $0x1b0] sm:$0xff]
          %v1052 = vld [vmem:[%s668 + $0x1b8] sm:$0xff]
          %v1053 = vld [vmem:[%s668 + $0x1c0] sm:$0xff]
          %v1054 = vld [vmem:[%s668 + $0x1c8] sm:$0xff]
          %v1055 = vld [vmem:[%s668 + $0x1d0] sm:$0xff]
          %v1056 = vld [vmem:[%s668 + $0x1d8] sm:$0xff]
          %v1057 = vld [vmem:[%s668 + $0x1e0] sm:$0xff]
          %v1058 = vld [vmem:[%s668 + $0x1e8] sm:$0xff]
          %v1059 = vld [vmem:[%s668 + $0x1f0] sm:$0xff]
          %v1060 = vld [vmem:[%s668 + $0x1f8] sm:$0xff]
          %v1125 = vunpack.c.l.b16 %v997
          %v1126 = vunpack.c.h.b16 %v997
          %v1127 = vunpack.c.l.b16 %v998
          %v1128 = vunpack.c.h.b16 %v998
          %v1129 = vunpack.c.l.b16 %v999
          %v1130 = vunpack.c.h.b16 %v999
          %v1131 = vunpack.c.l.b16 %v1000
          %v1132 = vunpack.c.h.b16 %v1000
          %v1133 = vunpack.c.l.b16 %v1001
          %v1134 = vunpack.c.h.b16 %v1001
          %v1135 = vunpack.c.l.b16 %v1002
          %v1136 = vunpack.c.h.b16 %v1002
          %v1137 = vunpack.c.l.b16 %v1003
          %v1138 = vunpack.c.h.b16 %v1003
          %v1139 = vunpack.c.l.b16 %v1004
          %v1140 = vunpack.c.h.b16 %v1004
          %v1141 = vunpack.c.l.b16 %v1005
          %v1142 = vunpack.c.h.b16 %v1005
          %v1143 = vunpack.c.l.b16 %v1006
          %v1144 = vunpack.c.h.b16 %v1006
          %v1145 = vunpack.c.l.b16 %v1007
          %v1146 = vunpack.c.h.b16 %v1007
          %v1147 = vunpack.c.l.b16 %v1008
          %v1148 = vunpack.c.h.b16 %v1008
          %v1149 = vunpack.c.l.b16 %v1009
          %v1150 = vunpack.c.h.b16 %v1009
          %v1151 = vunpack.c.l.b16 %v1010
          %v1152 = vunpack.c.h.b16 %v1010
          %v1153 = vunpack.c.l.b16 %v1011
          %v1154 = vunpack.c.h.b16 %v1011
          %v1155 = vunpack.c.l.b16 %v1012
          %v1156 = vunpack.c.h.b16 %v1012
          %v1157 = vunpack.c.l.b16 %v1013
          %v1158 = vunpack.c.h.b16 %v1013
          %v1159 = vunpack.c.l.b16 %v1014
          %v1160 = vunpack.c.h.b16 %v1014
          %v1161 = vunpack.c.l.b16 %v1015
          %v1162 = vunpack.c.h.b16 %v1015
          %v1163 = vunpack.c.l.b16 %v1016
          %v1164 = vunpack.c.h.b16 %v1016
          %v1165 = vunpack.c.l.b16 %v1017
          %v1166 = vunpack.c.h.b16 %v1017
          %v1167 = vunpack.c.l.b16 %v1018
          %v1168 = vunpack.c.h.b16 %v1018
          %v1169 = vunpack.c.l.b16 %v1019
          %v1170 = vunpack.c.h.b16 %v1019
          %v1171 = vunpack.c.l.b16 %v1020
          %v1172 = vunpack.c.h.b16 %v1020
          %v1173 = vunpack.c.l.b16 %v1021
          %v1174 = vunpack.c.h.b16 %v1021
          %v1175 = vunpack.c.l.b16 %v1022
          %v1176 = vunpack.c.h.b16 %v1022
          %v1177 = vunpack.c.l.b16 %v1023
          %v1178 = vunpack.c.h.b16 %v1023
          %v1179 = vunpack.c.l.b16 %v1024
          %v1180 = vunpack.c.h.b16 %v1024
          %v1181 = vunpack.c.l.b16 %v1025
          %v1182 = vunpack.c.h.b16 %v1025
          %v1183 = vunpack.c.l.b16 %v1026
          %v1184 = vunpack.c.h.b16 %v1026
          %v1185 = vunpack.c.l.b16 %v1027
          %v1186 = vunpack.c.h.b16 %v1027
          %v1187 = vunpack.c.l.b16 %v1028
          %v1188 = vunpack.c.h.b16 %v1028
          %v1189 = vunpack.c.l.b16 %v1029
          %v1190 = vunpack.c.h.b16 %v1029
          %v1191 = vunpack.c.l.b16 %v1030
          %v1192 = vunpack.c.h.b16 %v1030
          %v1193 = vunpack.c.l.b16 %v1031
          %v1194 = vunpack.c.h.b16 %v1031
          %v1195 = vunpack.c.l.b16 %v1032
          %v1196 = vunpack.c.h.b16 %v1032
          %v1197 = vunpack.c.l.b16 %v1033
          %v1198 = vunpack.c.h.b16 %v1033
          %v1199 = vunpack.c.l.b16 %v1034
          %v1200 = vunpack.c.h.b16 %v1034
          %v1201 = vunpack.c.l.b16 %v1035
          %v1202 = vunpack.c.h.b16 %v1035
          %v1203 = vunpack.c.l.b16 %v1036
          %v1204 = vunpack.c.h.b16 %v1036
          %v1205 = vunpack.c.l.b16 %v1037
          %v1206 = vunpack.c.h.b16 %v1037
          %v1207 = vunpack.c.l.b16 %v1038
          %v1208 = vunpack.c.h.b16 %v1038
          %v1209 = vunpack.c.l.b16 %v1039
          %v1210 = vunpack.c.h.b16 %v1039
          %v1211 = vunpack.c.l.b16 %v1040
          %v1212 = vunpack.c.h.b16 %v1040
          %v1213 = vunpack.c.l.b16 %v1041
          %v1214 = vunpack.c.h.b16 %v1041
          %v1215 = vunpack.c.l.b16 %v1042
          %v1216 = vunpack.c.h.b16 %v1042
          %v1217 = vunpack.c.l.b16 %v1043
          %v1218 = vunpack.c.h.b16 %v1043
          %v1219 = vunpack.c.l.b16 %v1044
          %v1220 = vunpack.c.h.b16 %v1044
          %v1221 = vunpack.c.l.b16 %v1045
          %v1222 = vunpack.c.h.b16 %v1045
          %v1223 = vunpack.c.l.b16 %v1046
          %v1224 = vunpack.c.h.b16 %v1046
          %v1225 = vunpack.c.l.b16 %v1047
          %v1226 = vunpack.c.h.b16 %v1047
          %v1227 = vunpack.c.l.b16 %v1048
          %v1228 = vunpack.c.h.b16 %v1048
          %v1229 = vunpack.c.l.b16 %v1049
          %v1230 = vunpack.c.h.b16 %v1049
          %v1231 = vunpack.c.l.b16 %v1050
          %v1232 = vunpack.c.h.b16 %v1050
          %v1233 = vunpack.c.l.b16 %v1051
          %v1234 = vunpack.c.h.b16 %v1051
          %v1235 = vunpack.c.l.b16 %v1052
          %v1236 = vunpack.c.h.b16 %v1052
          %v1237 = vunpack.c.l.b16 %v1053
          %v1238 = vunpack.c.h.b16 %v1053
          %v1239 = vunpack.c.l.b16 %v1054
          %v1240 = vunpack.c.h.b16 %v1054
          %v1241 = vunpack.c.l.b16 %v1055
          %v1242 = vunpack.c.h.b16 %v1055
          %v1243 = vunpack.c.l.b16 %v1056
          %v1244 = vunpack.c.h.b16 %v1056
          %v1245 = vunpack.c.l.b16 %v1057
          %v1246 = vunpack.c.h.b16 %v1057
          %v1247 = vunpack.c.l.b16 %v1058
          %v1248 = vunpack.c.h.b16 %v1058
          %v1249 = vunpack.c.l.b16 %v1059
          %v1250 = vunpack.c.h.b16 %v1059
          %v1251 = vunpack.c.l.b16 %v1060
          %v1252 = vunpack.c.h.b16 %v1060
          %v1253 = vpack.c.b16 %v1133, %v1125
          %v1254 = vpack.c.b16 %v1134, %v1126
          %v1255 = vpack.c.b16 %v1135, %v1127
          %v1256 = vpack.c.b16 %v1136, %v1128
          %v1257 = vpack.c.b16 %v1137, %v1129
          %v1258 = vpack.c.b16 %v1138, %v1130
          %v1259 = vpack.c.b16 %v1139, %v1131
          %v1260 = vpack.c.b16 %v1140, %v1132
          %v1261 = vpack.c.b16 %v1149, %v1141
          %v1262 = vpack.c.b16 %v1150, %v1142
          %v1263 = vpack.c.b16 %v1151, %v1143
          %v1264 = vpack.c.b16 %v1152, %v1144
          %v1265 = vpack.c.b16 %v1153, %v1145
          %v1266 = vpack.c.b16 %v1154, %v1146
          %v1267 = vpack.c.b16 %v1155, %v1147
          %v1268 = vpack.c.b16 %v1156, %v1148
          %v1269 = vpack.c.b16 %v1165, %v1157
          %v1270 = vpack.c.b16 %v1166, %v1158
          %v1271 = vpack.c.b16 %v1167, %v1159
          %v1272 = vpack.c.b16 %v1168, %v1160
          %v1273 = vpack.c.b16 %v1169, %v1161
          %v1274 = vpack.c.b16 %v1170, %v1162
          %v1275 = vpack.c.b16 %v1171, %v1163
          %v1276 = vpack.c.b16 %v1172, %v1164
          %v1277 = vpack.c.b16 %v1181, %v1173
          %v1278 = vpack.c.b16 %v1182, %v1174
          %v1279 = vpack.c.b16 %v1183, %v1175
          %v1280 = vpack.c.b16 %v1184, %v1176
          %v1281 = vpack.c.b16 %v1185, %v1177
          %v1282 = vpack.c.b16 %v1186, %v1178
          %v1283 = vpack.c.b16 %v1187, %v1179
          %v1284 = vpack.c.b16 %v1188, %v1180
          %v1285 = vpack.c.b16 %v1197, %v1189
          %v1286 = vpack.c.b16 %v1198, %v1190
          %v1287 = vpack.c.b16 %v1199, %v1191
          %v1288 = vpack.c.b16 %v1200, %v1192
          %v1289 = vpack.c.b16 %v1201, %v1193
          %v1290 = vpack.c.b16 %v1202, %v1194
          %v1291 = vpack.c.b16 %v1203, %v1195
          %v1292 = vpack.c.b16 %v1204, %v1196
          %v1293 = vpack.c.b16 %v1213, %v1205
          %v1294 = vpack.c.b16 %v1214, %v1206
          %v1295 = vpack.c.b16 %v1215, %v1207
          %v1296 = vpack.c.b16 %v1216, %v1208
          %v1297 = vpack.c.b16 %v1217, %v1209
          %v1298 = vpack.c.b16 %v1218, %v1210
          %v1299 = vpack.c.b16 %v1219, %v1211
          %v1300 = vpack.c.b16 %v1220, %v1212
          %v1301 = vpack.c.b16 %v1229, %v1221
          %v1302 = vpack.c.b16 %v1230, %v1222
          %v1303 = vpack.c.b16 %v1231, %v1223
          %v1304 = vpack.c.b16 %v1232, %v1224
          %v1305 = vpack.c.b16 %v1233, %v1225
          %v1306 = vpack.c.b16 %v1234, %v1226
          %v1307 = vpack.c.b16 %v1235, %v1227
          %v1308 = vpack.c.b16 %v1236, %v1228
          %v1309 = vpack.c.b16 %v1245, %v1237
          %v1310 = vpack.c.b16 %v1246, %v1238
          %v1311 = vpack.c.b16 %v1247, %v1239
          %v1312 = vpack.c.b16 %v1248, %v1240
          %v1313 = vpack.c.b16 %v1249, %v1241
          %v1314 = vpack.c.b16 %v1250, %v1242
          %v1315 = vpack.c.b16 %v1251, %v1243
          %v1316 = vpack.c.b16 %v1252, %v1244
          %1381 = vmatpush.bf16.msra.mxu0 %v1309
          %1382 = vmatpush.bf16.msra.mxu0 %v1301
          %1383 = vmatpush.bf16.msra.mxu0 %v1293
          %1384 = vmatpush.bf16.msra.mxu0 %v1285
          %1385 = vmatpush.bf16.msra.mxu0 %v1277
          %1386 = vmatpush.bf16.msra.mxu0 %v1269
          %1387 = vmatpush.bf16.msra.mxu0 %v1261
          %1388 = vmatpush.bf16.msra.mxu0 %v1253
          %1389 = vmatmul.bf16.gmra.mxu0 %v996
          %v1390 = vpop.f32.mrf.mxu0
          %v1391 = vadd.f32 0.0, %v1390
          %v1392 = vpop.f32.mrf.mxu0
          %1393 = vdwg.mxu0
          %1394 = vmatpush.bf16.msra.mxu0 %v1310
          %1395 = vmatpush.bf16.msra.mxu0 %v1302
          %1396 = vmatpush.bf16.msra.mxu0 %v1294
          %1397 = vmatpush.bf16.msra.mxu0 %v1286
          %1398 = vmatpush.bf16.msra.mxu0 %v1278
          %1399 = vmatpush.bf16.msra.mxu0 %v1270
          %1400 = vmatpush.bf16.msra.mxu0 %v1262
          %1401 = vmatpush.bf16.msra.mxu0 %v1254
          %1402 = vmatmul.bf16.gmra.mxu0 %v996
          %v1403 = vpop.f32.mrf.mxu0
          %v1404 = vadd.f32 0.0, %v1403
          %v1405 = vpop.f32.mrf.mxu0
          %1406 = vdwg.mxu0
          %1407 = vmatpush.bf16.msra.mxu0 %v1311
          %1408 = vmatpush.bf16.msra.mxu0 %v1303
          %1409 = vmatpush.bf16.msra.mxu0 %v1295
          %1410 = vmatpush.bf16.msra.mxu0 %v1287
          %1411 = vmatpush.bf16.msra.mxu0 %v1279
          %1412 = vmatpush.bf16.msra.mxu0 %v1271
          %1413 = vmatpush.bf16.msra.mxu0 %v1263
          %1414 = vmatpush.bf16.msra.mxu0 %v1255
          %1415 = vmatmul.bf16.gmra.mxu0 %v996
          %v1416 = vpop.f32.mrf.mxu0
          %v1417 = vadd.f32 0.0, %v1416
          %v1418 = vpop.f32.mrf.mxu0
          %1419 = vdwg.mxu0
          %1420 = vmatpush.bf16.msra.mxu0 %v1312
          %1421 = vmatpush.bf16.msra.mxu0 %v1304
          %1422 = vmatpush.bf16.msra.mxu0 %v1296
          %1423 = vmatpush.bf16.msra.mxu0 %v1288
          %1424 = vmatpush.bf16.msra.mxu0 %v1280
          %1425 = vmatpush.bf16.msra.mxu0 %v1272
          %1426 = vmatpush.bf16.msra.mxu0 %v1264
          %1427 = vmatpush.bf16.msra.mxu0 %v1256
          %1428 = vmatmul.bf16.gmra.mxu0 %v996
          %v1429 = vpop.f32.mrf.mxu0
          %v1430 = vadd.f32 0.0, %v1429
          %v1431 = vpop.f32.mrf.mxu0
          %1432 = vdwg.mxu0
          %1433 = vmatpush.bf16.msra.mxu0 %v1313
          %1434 = vmatpush.bf16.msra.mxu0 %v1305
          %1435 = vmatpush.bf16.msra.mxu0 %v1297
          %1436 = vmatpush.bf16.msra.mxu0 %v1289
          %1437 = vmatpush.bf16.msra.mxu0 %v1281
          %1438 = vmatpush.bf16.msra.mxu0 %v1273
          %1439 = vmatpush.bf16.msra.mxu0 %v1265
          %1440 = vmatpush.bf16.msra.mxu0 %v1257
          %1441 = vmatmul.bf16.gmra.mxu0 %v996
          %v1442 = vpop.f32.mrf.mxu0
          %v1443 = vadd.f32 0.0, %v1442
          %v1444 = vpop.f32.mrf.mxu0
          %1445 = vdwg.mxu0
          %1446 = vmatpush.bf16.msra.mxu0 %v1314
          %1447 = vmatpush.bf16.msra.mxu0 %v1306
          %1448 = vmatpush.bf16.msra.mxu0 %v1298
          %1449 = vmatpush.bf16.msra.mxu0 %v1290
          %1450 = vmatpush.bf16.msra.mxu0 %v1282
          %1451 = vmatpush.bf16.msra.mxu0 %v1274
          %1452 = vmatpush.bf16.msra.mxu0 %v1266
          %1453 = vmatpush.bf16.msra.mxu0 %v1258
          %1454 = vmatmul.bf16.gmra.mxu0 %v996
          %v1455 = vpop.f32.mrf.mxu0
          %v1456 = vadd.f32 0.0, %v1455
          %v1457 = vpop.f32.mrf.mxu0
          %1458 = vdwg.mxu0
          %1459 = vmatpush.bf16.msra.mxu0 %v1315
          %1460 = vmatpush.bf16.msra.mxu0 %v1307
          %1461 = vmatpush.bf16.msra.mxu0 %v1299
          %1462 = vmatpush.bf16.msra.mxu0 %v1291
          %1463 = vmatpush.bf16.msra.mxu0 %v1283
          %1464 = vmatpush.bf16.msra.mxu0 %v1275
          %1465 = vmatpush.bf16.msra.mxu0 %v1267
          %1466 = vmatpush.bf16.msra.mxu0 %v1259
          %1467 = vmatmul.bf16.gmra.mxu0 %v996
          %v1468 = vpop.f32.mrf.mxu0
          %v1469 = vadd.f32 0.0, %v1468
          %v1470 = vpop.f32.mrf.mxu0
          %1471 = vdwg.mxu0
          %1472 = vmatpush.bf16.msra.mxu0 %v1316
          %1473 = vmatpush.bf16.msra.mxu0 %v1308
          %1474 = vmatpush.bf16.msra.mxu0 %v1300
          %1475 = vmatpush.bf16.msra.mxu0 %v1292
          %1476 = vmatpush.bf16.msra.mxu0 %v1284
          %1477 = vmatpush.bf16.msra.mxu0 %v1276
          %1478 = vmatpush.bf16.msra.mxu0 %v1268
          %1479 = vmatpush.bf16.msra.mxu0 %v1260
          %1480 = vmatmul.bf16.gmra.mxu0 %v996
          %v1481 = vpop.f32.mrf.mxu0
          %v1482 = vadd.f32 0.0, %v1481
          %v1483 = vpop.f32.mrf.mxu0
          %1484 = vdwg.mxu0
          %p1485 = scmp.eq.s32.totalorder %s39, 0
          // Predicated region
          $region149: #{tpu_custom_call.1} parent=147 // pred_check
            %p1486 = pneg %p1485
          $region150: #{tpu_custom_call.1} parent=147 // pred_check_branch
            %1488 = sbr.rel (%p1486) target = $region152
          $region151: #{tpu_custom_call.1} parent=147 // pred_region
            %v1489 = vld [vmem:[#allocation16] sm:$0xff]
            %v1491 = vperm.slane %v1489, 0
            %v1492 = vperm.slane %v1489, 1
            %v1493 = vperm.slane %v1489, 2
            %v1494 = vperm.slane %v1489, 3
            %v1495 = vperm.slane %v1489, 4
            %v1496 = vperm.slane %v1489, 5
            %v1497 = vperm.slane %v1489, 6
            %v1498 = vperm.slane %v1489, 7
            %v1507 = vadd.f32 %v1391, %v1491
            %v1508 = vadd.f32 %v1404, %v1492
            %v1509 = vadd.f32 %v1417, %v1493
            %v1510 = vadd.f32 %v1430, %v1494
            %v1511 = vadd.f32 %v1443, %v1495
            %v1512 = vadd.f32 %v1456, %v1496
            %v1513 = vadd.f32 %v1469, %v1497
            %v1514 = vadd.f32 %v1482, %v1498
            %1515 = vst [vmem:[#allocation3] sm:$0xff] %v1507
            %1516 = vst [vmem:[#allocation3 + $0x8] sm:$0xff] %v1508
            %1517 = vst [vmem:[#allocation3 + $0x10] sm:$0xff] %v1509
            %1518 = vst [vmem:[#allocation3 + $0x18] sm:$0xff] %v1510
            %1519 = vst [vmem:[#allocation3 + $0x20] sm:$0xff] %v1511
            %1520 = vst [vmem:[#allocation3 + $0x28] sm:$0xff] %v1512
            %1521 = vst [vmem:[#allocation3 + $0x30] sm:$0xff] %v1513
            %1522 = vst [vmem:[#allocation3 + $0x38] sm:$0xff] %v1514
          $region152: #{tpu_custom_call.1} parent=147 // pred_fallthru
            _
          %p1523 = scmp.gt.s32.totalorder %s39, 0
          // Predicated region
          $region153: #{tpu_custom_call.1} parent=147 // pred_check
            %p1524 = pneg %p1523
          $region154: #{tpu_custom_call.1} parent=147 // pred_check_branch
            %1526 = sbr.rel (%p1524) target = $region156
          $region155: #{tpu_custom_call.1} parent=147 // pred_region
            %v1527 = vld [vmem:[#allocation3] sm:$0xff]
            %v1528 = vld [vmem:[#allocation3 + $0x8] sm:$0xff]
            %v1529 = vld [vmem:[#allocation3 + $0x10] sm:$0xff]
            %v1530 = vld [vmem:[#allocation3 + $0x18] sm:$0xff]
            %v1531 = vld [vmem:[#allocation3 + $0x20] sm:$0xff]
            %v1532 = vld [vmem:[#allocation3 + $0x28] sm:$0xff]
            %v1533 = vld [vmem:[#allocation3 + $0x30] sm:$0xff]
            %v1534 = vld [vmem:[#allocation3 + $0x38] sm:$0xff]
            %v1535 = vadd.f32 %v1527, %v1391
            %v1536 = vadd.f32 %v1528, %v1404
            %v1537 = vadd.f32 %v1529, %v1417
            %v1538 = vadd.f32 %v1530, %v1430
            %v1539 = vadd.f32 %v1531, %v1443
            %v1540 = vadd.f32 %v1532, %v1456
            %v1541 = vadd.f32 %v1533, %v1469
            %v1542 = vadd.f32 %v1534, %v1482
            %1543 = vst [vmem:[#allocation3] sm:$0xff] %v1535
            %1544 = vst [vmem:[#allocation3 + $0x8] sm:$0xff] %v1536
            %1545 = vst [vmem:[#allocation3 + $0x10] sm:$0xff] %v1537
            %1546 = vst [vmem:[#allocation3 + $0x18] sm:$0xff] %v1538
            %1547 = vst [vmem:[#allocation3 + $0x20] sm:$0xff] %v1539
            %1548 = vst [vmem:[#allocation3 + $0x28] sm:$0xff] %v1540
            %1549 = vst [vmem:[#allocation3 + $0x30] sm:$0xff] %v1541
            %1550 = vst [vmem:[#allocation3 + $0x38] sm:$0xff] %v1542
          $region156: #{tpu_custom_call.1} parent=147 // pred_fallthru
            _
          %p1551 = scmp.eq.s32.totalorder %s39, 8
          // Predicated region
          $region157: #{tpu_custom_call.1} parent=147 // pred_check
            %p1552 = pneg %p1551
          $region158: #{tpu_custom_call.1} parent=147 // pred_check_branch
            %1554 = sbr.rel (%p1552) target = $region160
          $region159: #{tpu_custom_call.1} parent=147 // pred_region
            %v1555 = vld [vmem:[#allocation3] sm:$0xff]
            %v1556 = vld [vmem:[#allocation3 + $0x8] sm:$0xff]
            %v1557 = vld [vmem:[#allocation3 + $0x10] sm:$0xff]
            %v1558 = vld [vmem:[#allocation3 + $0x18] sm:$0xff]
            %v1559 = vld [vmem:[#allocation3 + $0x20] sm:$0xff]
            %v1560 = vld [vmem:[#allocation3 + $0x28] sm:$0xff]
            %v1561 = vld [vmem:[#allocation3 + $0x30] sm:$0xff]
            %v1562 = vld [vmem:[#allocation3 + $0x38] sm:$0xff]
            %v1563 = vmul.f32 %v1555, 0.1
            %v1564 = vmul.f32 %v1556, 0.1
            %v1565 = vmul.f32 %v1557, 0.1
            %v1566 = vmul.f32 %v1558, 0.1
            %v1567 = vmul.f32 %v1559, 0.1
            %v1568 = vmul.f32 %v1560, 0.1
            %v1569 = vmul.f32 %v1561, 0.1
            %v1570 = vmul.f32 %v1562, 0.1
            %v1571 = vmax.f32 %v1555, %v1563
            %v1572 = vmax.f32 %v1556, %v1564
            %v1573 = vmax.f32 %v1557, %v1565
            %v1574 = vmax.f32 %v1558, %v1566
            %v1575 = vmax.f32 %v1559, %v1567
            %v1576 = vmax.f32 %v1560, %v1568
            %v1577 = vmax.f32 %v1561, %v1569
            %v1578 = vmax.f32 %v1562, %v1570
            %v1579 = vpack.c.bf16 %v1571, %v1571
            %v1580 = vpack.c.bf16 %v1572, %v1572
            %v1581 = vpack.c.bf16 %v1573, %v1573
            %v1582 = vpack.c.bf16 %v1574, %v1574
            %v1583 = vld [vmem:[#allocation17] sm:$0xff]
            %v1584 = vld [vmem:[#allocation17 + $0x8] sm:$0xff]
            %v1585 = vld [vmem:[#allocation17 + $0x10] sm:$0xff]
            %v1586 = vld [vmem:[#allocation17 + $0x18] sm:$0xff]
            %v1587 = vld [vmem:[#allocation17 + $0x20] sm:$0xff]
            %v1588 = vld [vmem:[#allocation17 + $0x28] sm:$0xff]
            %v1589 = vld [vmem:[#allocation17 + $0x30] sm:$0xff]
            %v1590 = vld [vmem:[#allocation17 + $0x38] sm:$0xff]
            %v1591 = vld [vmem:[#allocation17 + $0x40] sm:$0xff]
            %v1592 = vld [vmem:[#allocation17 + $0x48] sm:$0xff]
            %v1593 = vld [vmem:[#allocation17 + $0x50] sm:$0xff]
            %v1594 = vld [vmem:[#allocation17 + $0x58] sm:$0xff]
            %v1595 = vld [vmem:[#allocation17 + $0x60] sm:$0xff]
            %v1596 = vld [vmem:[#allocation17 + $0x68] sm:$0xff]
            %v1597 = vld [vmem:[#allocation17 + $0x70] sm:$0xff]
            %v1598 = vld [vmem:[#allocation17 + $0x78] sm:$0xff]
            %v1599 = vld [vmem:[#allocation17 + $0x80] sm:$0xff]
            %v1600 = vld [vmem:[#allocation17 + $0x88] sm:$0xff]
            %v1601 = vld [vmem:[#allocation17 + $0x90] sm:$0xff]
            %v1602 = vld [vmem:[#allocation17 + $0x98] sm:$0xff]
            %v1603 = vld [vmem:[#allocation17 + $0xa0] sm:$0xff]
            %v1604 = vld [vmem:[#allocation17 + $0xa8] sm:$0xff]
            %v1605 = vld [vmem:[#allocation17 + $0xb0] sm:$0xff]
            %v1606 = vld [vmem:[#allocation17 + $0xb8] sm:$0xff]
            %v1607 = vld [vmem:[#allocation17 + $0xc0] sm:$0xff]
            %v1608 = vld [vmem:[#allocation17 + $0xc8] sm:$0xff]
            %v1609 = vld [vmem:[#allocation17 + $0xd0] sm:$0xff]
            %v1610 = vld [vmem:[#allocation17 + $0xd8] sm:$0xff]
            %v1611 = vld [vmem:[#allocation17 + $0xe0] sm:$0xff]
            %v1612 = vld [vmem:[#allocation17 + $0xe8] sm:$0xff]
            %v1613 = vld [vmem:[#allocation17 + $0xf0] sm:$0xff]
            %v1614 = vld [vmem:[#allocation17 + $0xf8] sm:$0xff]
            %v1615 = vld [vmem:[#allocation17 + $0x100] sm:$0xff]
            %v1616 = vld [vmem:[#allocation17 + $0x108] sm:$0xff]
            %v1617 = vld [vmem:[#allocation17 + $0x110] sm:$0xff]
            %v1618 = vld [vmem:[#allocation17 + $0x118] sm:$0xff]
            %v1619 = vld [vmem:[#allocation17 + $0x120] sm:$0xff]
            %v1620 = vld [vmem:[#allocation17 + $0x128] sm:$0xff]
            %v1621 = vld [vmem:[#allocation17 + $0x130] sm:$0xff]
            %v1622 = vld [vmem:[#allocation17 + $0x138] sm:$0xff]
            %v1623 = vld [vmem:[#allocation17 + $0x140] sm:$0xff]
            %v1624 = vld [vmem:[#allocation17 + $0x148] sm:$0xff]
            %v1625 = vld [vmem:[#allocation17 + $0x150] sm:$0xff]
            %v1626 = vld [vmem:[#allocation17 + $0x158] sm:$0xff]
            %v1627 = vld [vmem:[#allocation17 + $0x160] sm:$0xff]
            %v1628 = vld [vmem:[#allocation17 + $0x168] sm:$0xff]
            %v1629 = vld [vmem:[#allocation17 + $0x170] sm:$0xff]
            %v1630 = vld [vmem:[#allocation17 + $0x178] sm:$0xff]
            %v1631 = vld [vmem:[#allocation17 + $0x180] sm:$0xff]
            %v1632 = vld [vmem:[#allocation17 + $0x188] sm:$0xff]
            %v1633 = vld [vmem:[#allocation17 + $0x190] sm:$0xff]
            %v1634 = vld [vmem:[#allocation17 + $0x198] sm:$0xff]
            %v1635 = vld [vmem:[#allocation17 + $0x1a0] sm:$0xff]
            %v1636 = vld [vmem:[#allocation17 + $0x1a8] sm:$0xff]
            %v1637 = vld [vmem:[#allocation17 + $0x1b0] sm:$0xff]
            %v1638 = vld [vmem:[#allocation17 + $0x1b8] sm:$0xff]
            %v1639 = vld [vmem:[#allocation17 + $0x1c0] sm:$0xff]
            %v1640 = vld [vmem:[#allocation17 + $0x1c8] sm:$0xff]
            %v1641 = vld [vmem:[#allocation17 + $0x1d0] sm:$0xff]
            %v1642 = vld [vmem:[#allocation17 + $0x1d8] sm:$0xff]
            %v1643 = vld [vmem:[#allocation17 + $0x1e0] sm:$0xff]
            %v1644 = vld [vmem:[#allocation17 + $0x1e8] sm:$0xff]
            %v1645 = vld [vmem:[#allocation17 + $0x1f0] sm:$0xff]
            %v1646 = vld [vmem:[#allocation17 + $0x1f8] sm:$0xff]
            %v1647 = vld [vmem:[#allocation18] sm:$0x3]
            %v1649 = vperm.slane %v1647, 0
            %v1650 = vperm.slane %v1647, 1
            %v1717 = vunpack.c.l.b16 %v1583
            %v1718 = vunpack.c.h.b16 %v1583
            %v1719 = vunpack.c.l.b16 %v1584
            %v1720 = vunpack.c.h.b16 %v1584
            %v1721 = vunpack.c.l.b16 %v1585
            %v1722 = vunpack.c.h.b16 %v1585
            %v1723 = vunpack.c.l.b16 %v1586
            %v1724 = vunpack.c.h.b16 %v1586
            %v1725 = vunpack.c.l.b16 %v1587
            %v1726 = vunpack.c.h.b16 %v1587
            %v1727 = vunpack.c.l.b16 %v1588
            %v1728 = vunpack.c.h.b16 %v1588
            %v1729 = vunpack.c.l.b16 %v1589
            %v1730 = vunpack.c.h.b16 %v1589
            %v1731 = vunpack.c.l.b16 %v1590
            %v1732 = vunpack.c.h.b16 %v1590
            %v1733 = vunpack.c.l.b16 %v1591
            %v1734 = vunpack.c.h.b16 %v1591
            %v1735 = vunpack.c.l.b16 %v1592
            %v1736 = vunpack.c.h.b16 %v1592
            %v1737 = vunpack.c.l.b16 %v1593
            %v1738 = vunpack.c.h.b16 %v1593
            %v1739 = vunpack.c.l.b16 %v1594
            %v1740 = vunpack.c.h.b16 %v1594
            %v1741 = vunpack.c.l.b16 %v1595
            %v1742 = vunpack.c.h.b16 %v1595
            %v1743 = vunpack.c.l.b16 %v1596
            %v1744 = vunpack.c.h.b16 %v1596
            %v1745 = vunpack.c.l.b16 %v1597
            %v1746 = vunpack.c.h.b16 %v1597
            %v1747 = vunpack.c.l.b16 %v1598
            %v1748 = vunpack.c.h.b16 %v1598
            %v1749 = vunpack.c.l.b16 %v1599
            %v1750 = vunpack.c.h.b16 %v1599
            %v1751 = vunpack.c.l.b16 %v1600
            %v1752 = vunpack.c.h.b16 %v1600
            %v1753 = vunpack.c.l.b16 %v1601
            %v1754 = vunpack.c.h.b16 %v1601
            %v1755 = vunpack.c.l.b16 %v1602
            %v1756 = vunpack.c.h.b16 %v1602
            %v1757 = vunpack.c.l.b16 %v1603
            %v1758 = vunpack.c.h.b16 %v1603
            %v1759 = vunpack.c.l.b16 %v1604
            %v1760 = vunpack.c.h.b16 %v1604
            %v1761 = vunpack.c.l.b16 %v1605
            %v1762 = vunpack.c.h.b16 %v1605
            %v1763 = vunpack.c.l.b16 %v1606
            %v1764 = vunpack.c.h.b16 %v1606
            %v1765 = vunpack.c.l.b16 %v1607
            %v1766 = vunpack.c.h.b16 %v1607
            %v1767 = vunpack.c.l.b16 %v1608
            %v1768 = vunpack.c.h.b16 %v1608
            %v1769 = vunpack.c.l.b16 %v1609
            %v1770 = vunpack.c.h.b16 %v1609
            %v1771 = vunpack.c.l.b16 %v1610
            %v1772 = vunpack.c.h.b16 %v1610
            %v1773 = vunpack.c.l.b16 %v1611
            %v1774 = vunpack.c.h.b16 %v1611
            %v1775 = vunpack.c.l.b16 %v1612
            %v1776 = vunpack.c.h.b16 %v1612
            %v1777 = vunpack.c.l.b16 %v1613
            %v1778 = vunpack.c.h.b16 %v1613
            %v1779 = vunpack.c.l.b16 %v1614
            %v1780 = vunpack.c.h.b16 %v1614
            %v1781 = vunpack.c.l.b16 %v1615
            %v1782 = vunpack.c.h.b16 %v1615
            %v1783 = vunpack.c.l.b16 %v1616
            %v1784 = vunpack.c.h.b16 %v1616
            %v1785 = vunpack.c.l.b16 %v1617
            %v1786 = vunpack.c.h.b16 %v1617
            %v1787 = vunpack.c.l.b16 %v1618
            %v1788 = vunpack.c.h.b16 %v1618
            %v1789 = vunpack.c.l.b16 %v1619
            %v1790 = vunpack.c.h.b16 %v1619
            %v1791 = vunpack.c.l.b16 %v1620
            %v1792 = vunpack.c.h.b16 %v1620
            %v1793 = vunpack.c.l.b16 %v1621
            %v1794 = vunpack.c.h.b16 %v1621
            %v1795 = vunpack.c.l.b16 %v1622
            %v1796 = vunpack.c.h.b16 %v1622
            %v1797 = vunpack.c.l.b16 %v1623
            %v1798 = vunpack.c.h.b16 %v1623
            %v1799 = vunpack.c.l.b16 %v1624
            %v1800 = vunpack.c.h.b16 %v1624
            %v1801 = vunpack.c.l.b16 %v1625
            %v1802 = vunpack.c.h.b16 %v1625
            %v1803 = vunpack.c.l.b16 %v1626
            %v1804 = vunpack.c.h.b16 %v1626
            %v1805 = vunpack.c.l.b16 %v1627
            %v1806 = vunpack.c.h.b16 %v1627
            %v1807 = vunpack.c.l.b16 %v1628
            %v1808 = vunpack.c.h.b16 %v1628
            %v1809 = vunpack.c.l.b16 %v1629
            %v1810 = vunpack.c.h.b16 %v1629
            %v1811 = vunpack.c.l.b16 %v1630
            %v1812 = vunpack.c.h.b16 %v1630
            %v1813 = vunpack.c.l.b16 %v1631
            %v1814 = vunpack.c.h.b16 %v1631
            %v1815 = vunpack.c.l.b16 %v1632
            %v1816 = vunpack.c.h.b16 %v1632
            %v1817 = vunpack.c.l.b16 %v1633
            %v1818 = vunpack.c.h.b16 %v1633
            %v1819 = vunpack.c.l.b16 %v1634
            %v1820 = vunpack.c.h.b16 %v1634
            %v1821 = vunpack.c.l.b16 %v1635
            %v1822 = vunpack.c.h.b16 %v1635
            %v1823 = vunpack.c.l.b16 %v1636
            %v1824 = vunpack.c.h.b16 %v1636
            %v1825 = vunpack.c.l.b16 %v1637
            %v1826 = vunpack.c.h.b16 %v1637
            %v1827 = vunpack.c.l.b16 %v1638
            %v1828 = vunpack.c.h.b16 %v1638
            %v1829 = vunpack.c.l.b16 %v1639
            %v1830 = vunpack.c.h.b16 %v1639
            %v1831 = vunpack.c.l.b16 %v1640
            %v1832 = vunpack.c.h.b16 %v1640
            %v1833 = vunpack.c.l.b16 %v1641
            %v1834 = vunpack.c.h.b16 %v1641
            %v1835 = vunpack.c.l.b16 %v1642
            %v1836 = vunpack.c.h.b16 %v1642
            %v1837 = vunpack.c.l.b16 %v1643
            %v1838 = vunpack.c.h.b16 %v1643
            %v1839 = vunpack.c.l.b16 %v1644
            %v1840 = vunpack.c.h.b16 %v1644
            %v1841 = vunpack.c.l.b16 %v1645
            %v1842 = vunpack.c.h.b16 %v1645
            %v1843 = vunpack.c.l.b16 %v1646
            %v1844 = vunpack.c.h.b16 %v1646
            %v1845 = vpack.c.b16 %v1719, %v1717
            %v1846 = vpack.c.b16 %v1720, %v1718
            %v1847 = vpack.c.b16 %v1723, %v1721
            %v1848 = vpack.c.b16 %v1724, %v1722
            %v1849 = vpack.c.b16 %v1727, %v1725
            %v1850 = vpack.c.b16 %v1728, %v1726
            %v1851 = vpack.c.b16 %v1731, %v1729
            %v1852 = vpack.c.b16 %v1732, %v1730
            %v1853 = vpack.c.b16 %v1735, %v1733
            %v1854 = vpack.c.b16 %v1736, %v1734
            %v1855 = vpack.c.b16 %v1739, %v1737
            %v1856 = vpack.c.b16 %v1740, %v1738
            %v1857 = vpack.c.b16 %v1743, %v1741
            %v1858 = vpack.c.b16 %v1744, %v1742
            %v1859 = vpack.c.b16 %v1747, %v1745
            %v1860 = vpack.c.b16 %v1748, %v1746
            %v1861 = vpack.c.b16 %v1751, %v1749
            %v1862 = vpack.c.b16 %v1752, %v1750
            %v1863 = vpack.c.b16 %v1755, %v1753
            %v1864 = vpack.c.b16 %v1756, %v1754
            %v1865 = vpack.c.b16 %v1759, %v1757
            %v1866 = vpack.c.b16 %v1760, %v1758
            %v1867 = vpack.c.b16 %v1763, %v1761
            %v1868 = vpack.c.b16 %v1764, %v1762
            %v1869 = vpack.c.b16 %v1767, %v1765
            %v1870 = vpack.c.b16 %v1768, %v1766
            %v1871 = vpack.c.b16 %v1771, %v1769
            %v1872 = vpack.c.b16 %v1772, %v1770
            %v1873 = vpack.c.b16 %v1775, %v1773
            %v1874 = vpack.c.b16 %v1776, %v1774
            %v1875 = vpack.c.b16 %v1779, %v1777
            %v1876 = vpack.c.b16 %v1780, %v1778
            %v1877 = vpack.c.b16 %v1783, %v1781
            %v1878 = vpack.c.b16 %v1784, %v1782
            %v1879 = vpack.c.b16 %v1787, %v1785
            %v1880 = vpack.c.b16 %v1788, %v1786
            %v1881 = vpack.c.b16 %v1791, %v1789
            %v1882 = vpack.c.b16 %v1792, %v1790
            %v1883 = vpack.c.b16 %v1795, %v1793
            %v1884 = vpack.c.b16 %v1796, %v1794
            %v1885 = vpack.c.b16 %v1799, %v1797
            %v1886 = vpack.c.b16 %v1800, %v1798
            %v1887 = vpack.c.b16 %v1803, %v1801
            %v1888 = vpack.c.b16 %v1804, %v1802
            %v1889 = vpack.c.b16 %v1807, %v1805
            %v1890 = vpack.c.b16 %v1808, %v1806
            %v1891 = vpack.c.b16 %v1811, %v1809
            %v1892 = vpack.c.b16 %v1812, %v1810
            %v1893 = vpack.c.b16 %v1815, %v1813
            %v1894 = vpack.c.b16 %v1816, %v1814
            %v1895 = vpack.c.b16 %v1819, %v1817
            %v1896 = vpack.c.b16 %v1820, %v1818
            %v1897 = vpack.c.b16 %v1823, %v1821
            %v1898 = vpack.c.b16 %v1824, %v1822
            %v1899 = vpack.c.b16 %v1827, %v1825
            %v1900 = vpack.c.b16 %v1828, %v1826
            %v1901 = vpack.c.b16 %v1831, %v1829
            %v1902 = vpack.c.b16 %v1832, %v1830
            %v1903 = vpack.c.b16 %v1835, %v1833
            %v1904 = vpack.c.b16 %v1836, %v1834
            %v1905 = vpack.c.b16 %v1839, %v1837
            %v1906 = vpack.c.b16 %v1840, %v1838
            %v1907 = vpack.c.b16 %v1843, %v1841
            %v1908 = vpack.c.b16 %v1844, %v1842
            %1973 = vmatpush.bf16.msra.mxu0 %v1859
            %1974 = vmatpush.bf16.msra.mxu0 %v1857
            %1975 = vmatpush.bf16.msra.mxu0 %v1855
            %1976 = vmatpush.bf16.msra.mxu0 %v1853
            %1977 = vmatpush.bf16.msra.mxu0 %v1851
            %1978 = vmatpush.bf16.msra.mxu0 %v1849
            %1979 = vmatpush.bf16.msra.mxu0 %v1847
            %1980 = vmatpush.bf16.msra.mxu0 %v1845
            %1981 = vmatmul.bf16.gmra.mxu0 %v1579
            %v1982 = vpop.f32.mrf.mxu0
            %v1983 = vadd.f32 %v1649, %v1982
            %v1984 = vpop.f32.mrf.mxu0
            %1985 = vdwg.mxu0
            %1986 = vmatpush.bf16.msra.mxu0 %v1875
            %1987 = vmatpush.bf16.msra.mxu0 %v1873
            %1988 = vmatpush.bf16.msra.mxu0 %v1871
            %1989 = vmatpush.bf16.msra.mxu0 %v1869
            %1990 = vmatpush.bf16.msra.mxu0 %v1867
            %1991 = vmatpush.bf16.msra.mxu0 %v1865
            %1992 = vmatpush.bf16.msra.mxu0 %v1863
            %1993 = vmatpush.bf16.msra.mxu0 %v1861
            %1994 = vmatmul.bf16.gmra.mxu0 %v1580
            %v1995 = vpop.f32.mrf.mxu0
            %v1996 = vadd.f32 %v1983, %v1995
            %v1997 = vpop.f32.mrf.mxu0
            %1998 = vdwg.mxu0
            %1999 = vmatpush.bf16.msra.mxu0 %v1891
            %2000 = vmatpush.bf16.msra.mxu0 %v1889
            %2001 = vmatpush.bf16.msra.mxu0 %v1887
            %2002 = vmatpush.bf16.msra.mxu0 %v1885
            %2003 = vmatpush.bf16.msra.mxu0 %v1883
            %2004 = vmatpush.bf16.msra.mxu0 %v1881
            %2005 = vmatpush.bf16.msra.mxu0 %v1879
            %2006 = vmatpush.bf16.msra.mxu0 %v1877
            %2007 = vmatmul.bf16.gmra.mxu0 %v1581
            %v2008 = vpop.f32.mrf.mxu0
            %v2009 = vadd.f32 %v1996, %v2008
            %v2010 = vpop.f32.mrf.mxu0
            %2011 = vdwg.mxu0
            %2012 = vmatpush.bf16.msra.mxu0 %v1907
            %2013 = vmatpush.bf16.msra.mxu0 %v1905
            %2014 = vmatpush.bf16.msra.mxu0 %v1903
            %2015 = vmatpush.bf16.msra.mxu0 %v1901
            %2016 = vmatpush.bf16.msra.mxu0 %v1899
            %2017 = vmatpush.bf16.msra.mxu0 %v1897
            %2018 = vmatpush.bf16.msra.mxu0 %v1895
            %2019 = vmatpush.bf16.msra.mxu0 %v1893
            %2020 = vmatmul.bf16.gmra.mxu0 %v1582
            %v2021 = vpop.f32.mrf.mxu0
            %v2022 = vadd.f32 %v2009, %v2021
            %v2023 = vpop.f32.mrf.mxu0
            %2024 = vdwg.mxu0
            %2025 = vmatpush.bf16.msra.mxu0 %v1860
            %2026 = vmatpush.bf16.msra.mxu0 %v1858
            %2027 = vmatpush.bf16.msra.mxu0 %v1856
            %2028 = vmatpush.bf16.msra.mxu0 %v1854
            %2029 = vmatpush.bf16.msra.mxu0 %v1852
            %2030 = vmatpush.bf16.msra.mxu0 %v1850
            %2031 = vmatpush.bf16.msra.mxu0 %v1848
            %2032 = vmatpush.bf16.msra.mxu0 %v1846
            %2033 = vmatmul.bf16.gmra.mxu0 %v1579
            %v2034 = vpop.f32.mrf.mxu0
            %v2035 = vadd.f32 %v1650, %v2034
            %v2036 = vpop.f32.mrf.mxu0
            %2037 = vdwg.mxu0
            %2038 = vmatpush.bf16.msra.mxu0 %v1876
            %2039 = vmatpush.bf16.msra.mxu0 %v1874
            %2040 = vmatpush.bf16.msra.mxu0 %v1872
            %2041 = vmatpush.bf16.msra.mxu0 %v1870
            %2042 = vmatpush.bf16.msra.mxu0 %v1868
            %2043 = vmatpush.bf16.msra.mxu0 %v1866
            %2044 = vmatpush.bf16.msra.mxu0 %v1864
            %2045 = vmatpush.bf16.msra.mxu0 %v1862
            %2046 = vmatmul.bf16.gmra.mxu0 %v1580
            %v2047 = vpop.f32.mrf.mxu0
            %v2048 = vadd.f32 %v2035, %v2047
            %v2049 = vpop.f32.mrf.mxu0
            %2050 = vdwg.mxu0
            %2051 = vmatpush.bf16.msra.mxu0 %v1892
            %2052 = vmatpush.bf16.msra.mxu0 %v1890
            %2053 = vmatpush.bf16.msra.mxu0 %v1888
            %2054 = vmatpush.bf16.msra.mxu0 %v1886
            %2055 = vmatpush.bf16.msra.mxu0 %v1884
            %2056 = vmatpush.bf16.msra.mxu0 %v1882
            %2057 = vmatpush.bf16.msra.mxu0 %v1880
            %2058 = vmatpush.bf16.msra.mxu0 %v1878
            %2059 = vmatmul.bf16.gmra.mxu0 %v1581
            %v2060 = vpop.f32.mrf.mxu0
            %v2061 = vadd.f32 %v2048, %v2060
            %v2062 = vpop.f32.mrf.mxu0
            %2063 = vdwg.mxu0
            %2064 = vmatpush.bf16.msra.mxu0 %v1908
            %2065 = vmatpush.bf16.msra.mxu0 %v1906
            %2066 = vmatpush.bf16.msra.mxu0 %v1904
            %2067 = vmatpush.bf16.msra.mxu0 %v1902
            %2068 = vmatpush.bf16.msra.mxu0 %v1900
            %2069 = vmatpush.bf16.msra.mxu0 %v1898
            %2070 = vmatpush.bf16.msra.mxu0 %v1896
            %2071 = vmatpush.bf16.msra.mxu0 %v1894
            %2072 = vmatmul.bf16.gmra.mxu0 %v1582
            %v2073 = vpop.f32.mrf.mxu0
            %v2074 = vadd.f32 %v2061, %v2073
            %v2075 = vpop.f32.mrf.mxu0
            %2076 = vdwg.mxu0
            %v2077 = vmul.f32 %v2022, 0.1
            %v2078 = vmul.f32 %v2074, 0.1
            %v2079 = vmax.f32 %v2022, %v2077
            %v2080 = vmax.f32 %v2074, %v2078
            %v2081 = vpack.c.bf16 %v1575, %v1575
            %v2082 = vpack.c.bf16 %v1576, %v1576
            %v2083 = vpack.c.bf16 %v1577, %v1577
            %v2084 = vpack.c.bf16 %v1578, %v1578
            %v2085 = vld [vmem:[#allocation19] sm:$0xff]
            %v2086 = vld [vmem:[#allocation19 + $0x8] sm:$0xff]
            %v2087 = vld [vmem:[#allocation19 + $0x10] sm:$0xff]
            %v2088 = vld [vmem:[#allocation19 + $0x18] sm:$0xff]
            %v2089 = vld [vmem:[#allocation19 + $0x20] sm:$0xff]
            %v2090 = vld [vmem:[#allocation19 + $0x28] sm:$0xff]
            %v2091 = vld [vmem:[#allocation19 + $0x30] sm:$0xff]
            %v2092 = vld [vmem:[#allocation19 + $0x38] sm:$0xff]
            %v2093 = vld [vmem:[#allocation19 + $0x40] sm:$0xff]
            %v2094 = vld [vmem:[#allocation19 + $0x48] sm:$0xff]
            %v2095 = vld [vmem:[#allocation19 + $0x50] sm:$0xff]
            %v2096 = vld [vmem:[#allocation19 + $0x58] sm:$0xff]
            %v2097 = vld [vmem:[#allocation19 + $0x60] sm:$0xff]
            %v2098 = vld [vmem:[#allocation19 + $0x68] sm:$0xff]
            %v2099 = vld [vmem:[#allocation19 + $0x70] sm:$0xff]
            %v2100 = vld [vmem:[#allocation19 + $0x78] sm:$0xff]
            %v2101 = vld [vmem:[#allocation19 + $0x80] sm:$0xff]
            %v2102 = vld [vmem:[#allocation19 + $0x88] sm:$0xff]
            %v2103 = vld [vmem:[#allocation19 + $0x90] sm:$0xff]
            %v2104 = vld [vmem:[#allocation19 + $0x98] sm:$0xff]
            %v2105 = vld [vmem:[#allocation19 + $0xa0] sm:$0xff]
            %v2106 = vld [vmem:[#allocation19 + $0xa8] sm:$0xff]
            %v2107 = vld [vmem:[#allocation19 + $0xb0] sm:$0xff]
            %v2108 = vld [vmem:[#allocation19 + $0xb8] sm:$0xff]
            %v2109 = vld [vmem:[#allocation19 + $0xc0] sm:$0xff]
            %v2110 = vld [vmem:[#allocation19 + $0xc8] sm:$0xff]
            %v2111 = vld [vmem:[#allocation19 + $0xd0] sm:$0xff]
            %v2112 = vld [vmem:[#allocation19 + $0xd8] sm:$0xff]
            %v2113 = vld [vmem:[#allocation19 + $0xe0] sm:$0xff]
            %v2114 = vld [vmem:[#allocation19 + $0xe8] sm:$0xff]
            %v2115 = vld [vmem:[#allocation19 + $0xf0] sm:$0xff]
            %v2116 = vld [vmem:[#allocation19 + $0xf8] sm:$0xff]
            %v2117 = vld [vmem:[#allocation19 + $0x100] sm:$0xff]
            %v2118 = vld [vmem:[#allocation19 + $0x108] sm:$0xff]
            %v2119 = vld [vmem:[#allocation19 + $0x110] sm:$0xff]
            %v2120 = vld [vmem:[#allocation19 + $0x118] sm:$0xff]
            %v2121 = vld [vmem:[#allocation19 + $0x120] sm:$0xff]
            %v2122 = vld [vmem:[#allocation19 + $0x128] sm:$0xff]
            %v2123 = vld [vmem:[#allocation19 + $0x130] sm:$0xff]
            %v2124 = vld [vmem:[#allocation19 + $0x138] sm:$0xff]
            %v2125 = vld [vmem:[#allocation19 + $0x140] sm:$0xff]
            %v2126 = vld [vmem:[#allocation19 + $0x148] sm:$0xff]
            %v2127 = vld [vmem:[#allocation19 + $0x150] sm:$0xff]
            %v2128 = vld [vmem:[#allocation19 + $0x158] sm:$0xff]
            %v2129 = vld [vmem:[#allocation19 + $0x160] sm:$0xff]
            %v2130 = vld [vmem:[#allocation19 + $0x168] sm:$0xff]
            %v2131 = vld [vmem:[#allocation19 + $0x170] sm:$0xff]
            %v2132 = vld [vmem:[#allocation19 + $0x178] sm:$0xff]
            %v2133 = vld [vmem:[#allocation19 + $0x180] sm:$0xff]
            %v2134 = vld [vmem:[#allocation19 + $0x188] sm:$0xff]
            %v2135 = vld [vmem:[#allocation19 + $0x190] sm:$0xff]
            %v2136 = vld [vmem:[#allocation19 + $0x198] sm:$0xff]
            %v2137 = vld [vmem:[#allocation19 + $0x1a0] sm:$0xff]
            %v2138 = vld [vmem:[#allocation19 + $0x1a8] sm:$0xff]
            %v2139 = vld [vmem:[#allocation19 + $0x1b0] sm:$0xff]
            %v2140 = vld [vmem:[#allocation19 + $0x1b8] sm:$0xff]
            %v2141 = vld [vmem:[#allocation19 + $0x1c0] sm:$0xff]
            %v2142 = vld [vmem:[#allocation19 + $0x1c8] sm:$0xff]
            %v2143 = vld [vmem:[#allocation19 + $0x1d0] sm:$0xff]
            %v2144 = vld [vmem:[#allocation19 + $0x1d8] sm:$0xff]
            %v2145 = vld [vmem:[#allocation19 + $0x1e0] sm:$0xff]
            %v2146 = vld [vmem:[#allocation19 + $0x1e8] sm:$0xff]
            %v2147 = vld [vmem:[#allocation19 + $0x1f0] sm:$0xff]
            %v2148 = vld [vmem:[#allocation19 + $0x1f8] sm:$0xff]
            %v2149 = vld [vmem:[#allocation21] sm:$0x3]
            %v2151 = vperm.slane %v2149, 0
            %v2152 = vperm.slane %v2149, 1
            %v2219 = vunpack.c.l.b16 %v2085
            %v2220 = vunpack.c.h.b16 %v2085
            %v2221 = vunpack.c.l.b16 %v2086
            %v2222 = vunpack.c.h.b16 %v2086
            %v2223 = vunpack.c.l.b16 %v2087
            %v2224 = vunpack.c.h.b16 %v2087
            %v2225 = vunpack.c.l.b16 %v2088
            %v2226 = vunpack.c.h.b16 %v2088
            %v2227 = vunpack.c.l.b16 %v2089
            %v2228 = vunpack.c.h.b16 %v2089
            %v2229 = vunpack.c.l.b16 %v2090
            %v2230 = vunpack.c.h.b16 %v2090
            %v2231 = vunpack.c.l.b16 %v2091
            %v2232 = vunpack.c.h.b16 %v2091
            %v2233 = vunpack.c.l.b16 %v2092
            %v2234 = vunpack.c.h.b16 %v2092
            %v2235 = vunpack.c.l.b16 %v2093
            %v2236 = vunpack.c.h.b16 %v2093
            %v2237 = vunpack.c.l.b16 %v2094
            %v2238 = vunpack.c.h.b16 %v2094
            %v2239 = vunpack.c.l.b16 %v2095
            %v2240 = vunpack.c.h.b16 %v2095
            %v2241 = vunpack.c.l.b16 %v2096
            %v2242 = vunpack.c.h.b16 %v2096
            %v2243 = vunpack.c.l.b16 %v2097
            %v2244 = vunpack.c.h.b16 %v2097
            %v2245 = vunpack.c.l.b16 %v2098
            %v2246 = vunpack.c.h.b16 %v2098
            %v2247 = vunpack.c.l.b16 %v2099
            %v2248 = vunpack.c.h.b16 %v2099
            %v2249 = vunpack.c.l.b16 %v2100
            %v2250 = vunpack.c.h.b16 %v2100
            %v2251 = vunpack.c.l.b16 %v2101
            %v2252 = vunpack.c.h.b16 %v2101
            %v2253 = vunpack.c.l.b16 %v2102
            %v2254 = vunpack.c.h.b16 %v2102
            %v2255 = vunpack.c.l.b16 %v2103
            %v2256 = vunpack.c.h.b16 %v2103
            %v2257 = vunpack.c.l.b16 %v2104
            %v2258 = vunpack.c.h.b16 %v2104
            %v2259 = vunpack.c.l.b16 %v2105
            %v2260 = vunpack.c.h.b16 %v2105
            %v2261 = vunpack.c.l.b16 %v2106
            %v2262 = vunpack.c.h.b16 %v2106
            %v2263 = vunpack.c.l.b16 %v2107
            %v2264 = vunpack.c.h.b16 %v2107
            %v2265 = vunpack.c.l.b16 %v2108
            %v2266 = vunpack.c.h.b16 %v2108
            %v2267 = vunpack.c.l.b16 %v2109
            %v2268 = vunpack.c.h.b16 %v2109
            %v2269 = vunpack.c.l.b16 %v2110
            %v2270 = vunpack.c.h.b16 %v2110
            %v2271 = vunpack.c.l.b16 %v2111
            %v2272 = vunpack.c.h.b16 %v2111
            %v2273 = vunpack.c.l.b16 %v2112
            %v2274 = vunpack.c.h.b16 %v2112
            %v2275 = vunpack.c.l.b16 %v2113
            %v2276 = vunpack.c.h.b16 %v2113
            %v2277 = vunpack.c.l.b16 %v2114
            %v2278 = vunpack.c.h.b16 %v2114
            %v2279 = vunpack.c.l.b16 %v2115
            %v2280 = vunpack.c.h.b16 %v2115
            %v2281 = vunpack.c.l.b16 %v2116
            %v2282 = vunpack.c.h.b16 %v2116
            %v2283 = vunpack.c.l.b16 %v2117
            %v2284 = vunpack.c.h.b16 %v2117
            %v2285 = vunpack.c.l.b16 %v2118
            %v2286 = vunpack.c.h.b16 %v2118
            %v2287 = vunpack.c.l.b16 %v2119
            %v2288 = vunpack.c.h.b16 %v2119
            %v2289 = vunpack.c.l.b16 %v2120
            %v2290 = vunpack.c.h.b16 %v2120
            %v2291 = vunpack.c.l.b16 %v2121
            %v2292 = vunpack.c.h.b16 %v2121
            %v2293 = vunpack.c.l.b16 %v2122
            %v2294 = vunpack.c.h.b16 %v2122
            %v2295 = vunpack.c.l.b16 %v2123
            %v2296 = vunpack.c.h.b16 %v2123
            %v2297 = vunpack.c.l.b16 %v2124
            %v2298 = vunpack.c.h.b16 %v2124
            %v2299 = vunpack.c.l.b16 %v2125
            %v2300 = vunpack.c.h.b16 %v2125
            %v2301 = vunpack.c.l.b16 %v2126
            %v2302 = vunpack.c.h.b16 %v2126
            %v2303 = vunpack.c.l.b16 %v2127
            %v2304 = vunpack.c.h.b16 %v2127
            %v2305 = vunpack.c.l.b16 %v2128
            %v2306 = vunpack.c.h.b16 %v2128
            %v2307 = vunpack.c.l.b16 %v2129
            %v2308 = vunpack.c.h.b16 %v2129
            %v2309 = vunpack.c.l.b16 %v2130
            %v2310 = vunpack.c.h.b16 %v2130
            %v2311 = vunpack.c.l.b16 %v2131
            %v2312 = vunpack.c.h.b16 %v2131
            %v2313 = vunpack.c.l.b16 %v2132
            %v2314 = vunpack.c.h.b16 %v2132
            %v2315 = vunpack.c.l.b16 %v2133
            %v2316 = vunpack.c.h.b16 %v2133
            %v2317 = vunpack.c.l.b16 %v2134
            %v2318 = vunpack.c.h.b16 %v2134
            %v2319 = vunpack.c.l.b16 %v2135
            %v2320 = vunpack.c.h.b16 %v2135
            %v2321 = vunpack.c.l.b16 %v2136
            %v2322 = vunpack.c.h.b16 %v2136
            %v2323 = vunpack.c.l.b16 %v2137
            %v2324 = vunpack.c.h.b16 %v2137
            %v2325 = vunpack.c.l.b16 %v2138
            %v2326 = vunpack.c.h.b16 %v2138
            %v2327 = vunpack.c.l.b16 %v2139
            %v2328 = vunpack.c.h.b16 %v2139
            %v2329 = vunpack.c.l.b16 %v2140
            %v2330 = vunpack.c.h.b16 %v2140
            %v2331 = vunpack.c.l.b16 %v2141
            %v2332 = vunpack.c.h.b16 %v2141
            %v2333 = vunpack.c.l.b16 %v2142
            %v2334 = vunpack.c.h.b16 %v2142
            %v2335 = vunpack.c.l.b16 %v2143
            %v2336 = vunpack.c.h.b16 %v2143
            %v2337 = vunpack.c.l.b16 %v2144
            %v2338 = vunpack.c.h.b16 %v2144
            %v2339 = vunpack.c.l.b16 %v2145
            %v2340 = vunpack.c.h.b16 %v2145
            %v2341 = vunpack.c.l.b16 %v2146
            %v2342 = vunpack.c.h.b16 %v2146
            %v2343 = vunpack.c.l.b16 %v2147
            %v2344 = vunpack.c.h.b16 %v2147
            %v2345 = vunpack.c.l.b16 %v2148
            %v2346 = vunpack.c.h.b16 %v2148
            %v2347 = vpack.c.b16 %v2221, %v2219
            %v2348 = vpack.c.b16 %v2222, %v2220
            %v2349 = vpack.c.b16 %v2225, %v2223
            %v2350 = vpack.c.b16 %v2226, %v2224
            %v2351 = vpack.c.b16 %v2229, %v2227
            %v2352 = vpack.c.b16 %v2230, %v2228
            %v2353 = vpack.c.b16 %v2233, %v2231
            %v2354 = vpack.c.b16 %v2234, %v2232
            %v2355 = vpack.c.b16 %v2237, %v2235
            %v2356 = vpack.c.b16 %v2238, %v2236
            %v2357 = vpack.c.b16 %v2241, %v2239
            %v2358 = vpack.c.b16 %v2242, %v2240
            %v2359 = vpack.c.b16 %v2245, %v2243
            %v2360 = vpack.c.b16 %v2246, %v2244
            %v2361 = vpack.c.b16 %v2249, %v2247
            %v2362 = vpack.c.b16 %v2250, %v2248
            %v2363 = vpack.c.b16 %v2253, %v2251
            %v2364 = vpack.c.b16 %v2254, %v2252
            %v2365 = vpack.c.b16 %v2257, %v2255
            %v2366 = vpack.c.b16 %v2258, %v2256
            %v2367 = vpack.c.b16 %v2261, %v2259
            %v2368 = vpack.c.b16 %v2262, %v2260
            %v2369 = vpack.c.b16 %v2265, %v2263
            %v2370 = vpack.c.b16 %v2266, %v2264
            %v2371 = vpack.c.b16 %v2269, %v2267
            %v2372 = vpack.c.b16 %v2270, %v2268
            %v2373 = vpack.c.b16 %v2273, %v2271
            %v2374 = vpack.c.b16 %v2274, %v2272
            %v2375 = vpack.c.b16 %v2277, %v2275
            %v2376 = vpack.c.b16 %v2278, %v2276
            %v2377 = vpack.c.b16 %v2281, %v2279
            %v2378 = vpack.c.b16 %v2282, %v2280
            %v2379 = vpack.c.b16 %v2285, %v2283
            %v2380 = vpack.c.b16 %v2286, %v2284
            %v2381 = vpack.c.b16 %v2289, %v2287
            %v2382 = vpack.c.b16 %v2290, %v2288
            %v2383 = vpack.c.b16 %v2293, %v2291
            %v2384 = vpack.c.b16 %v2294, %v2292
            %v2385 = vpack.c.b16 %v2297, %v2295
            %v2386 = vpack.c.b16 %v2298, %v2296
            %v2387 = vpack.c.b16 %v2301, %v2299
            %v2388 = vpack.c.b16 %v2302, %v2300
            %v2389 = vpack.c.b16 %v2305, %v2303
            %v2390 = vpack.c.b16 %v2306, %v2304
            %v2391 = vpack.c.b16 %v2309, %v2307
            %v2392 = vpack.c.b16 %v2310, %v2308
            %v2393 = vpack.c.b16 %v2313, %v2311
            %v2394 = vpack.c.b16 %v2314, %v2312
            %v2395 = vpack.c.b16 %v2317, %v2315
            %v2396 = vpack.c.b16 %v2318, %v2316
            %v2397 = vpack.c.b16 %v2321, %v2319
            %v2398 = vpack.c.b16 %v2322, %v2320
            %v2399 = vpack.c.b16 %v2325, %v2323
            %v2400 = vpack.c.b16 %v2326, %v2324
            %v2401 = vpack.c.b16 %v2329, %v2327
            %v2402 = vpack.c.b16 %v2330, %v2328
            %v2403 = vpack.c.b16 %v2333, %v2331
            %v2404 = vpack.c.b16 %v2334, %v2332
            %v2405 = vpack.c.b16 %v2337, %v2335
            %v2406 = vpack.c.b16 %v2338, %v2336
            %v2407 = vpack.c.b16 %v2341, %v2339
            %v2408 = vpack.c.b16 %v2342, %v2340
            %v2409 = vpack.c.b16 %v2345, %v2343
            %v2410 = vpack.c.b16 %v2346, %v2344
            %2475 = vmatpush.bf16.msra.mxu0 %v2361
            %2476 = vmatpush.bf16.msra.mxu0 %v2359
            %2477 = vmatpush.bf16.msra.mxu0 %v2357
            %2478 = vmatpush.bf16.msra.mxu0 %v2355
            %2479 = vmatpush.bf16.msra.mxu0 %v2353
            %2480 = vmatpush.bf16.msra.mxu0 %v2351
            %2481 = vmatpush.bf16.msra.mxu0 %v2349
            %2482 = vmatpush.bf16.msra.mxu0 %v2347
            %2483 = vmatmul.bf16.gmra.mxu0 %v2081
            %v2484 = vpop.f32.mrf.mxu0
            %v2485 = vadd.f32 %v2151, %v2484
            %v2486 = vpop.f32.mrf.mxu0
            %2487 = vdwg.mxu0
            %2488 = vmatpush.bf16.msra.mxu0 %v2377
            %2489 = vmatpush.bf16.msra.mxu0 %v2375
            %2490 = vmatpush.bf16.msra.mxu0 %v2373
            %2491 = vmatpush.bf16.msra.mxu0 %v2371
            %2492 = vmatpush.bf16.msra.mxu0 %v2369
            %2493 = vmatpush.bf16.msra.mxu0 %v2367
            %2494 = vmatpush.bf16.msra.mxu0 %v2365
            %2495 = vmatpush.bf16.msra.mxu0 %v2363
            %2496 = vmatmul.bf16.gmra.mxu0 %v2082
            %v2497 = vpop.f32.mrf.mxu0
            %v2498 = vadd.f32 %v2485, %v2497
            %v2499 = vpop.f32.mrf.mxu0
            %2500 = vdwg.mxu0
            %2501 = vmatpush.bf16.msra.mxu0 %v2393
            %2502 = vmatpush.bf16.msra.mxu0 %v2391
            %2503 = vmatpush.bf16.msra.mxu0 %v2389
            %2504 = vmatpush.bf16.msra.mxu0 %v2387
            %2505 = vmatpush.bf16.msra.mxu0 %v2385
            %2506 = vmatpush.bf16.msra.mxu0 %v2383
            %2507 = vmatpush.bf16.msra.mxu0 %v2381
            %2508 = vmatpush.bf16.msra.mxu0 %v2379
            %2509 = vmatmul.bf16.gmra.mxu0 %v2083
            %v2510 = vpop.f32.mrf.mxu0
            %v2511 = vadd.f32 %v2498, %v2510
            %v2512 = vpop.f32.mrf.mxu0
            %2513 = vdwg.mxu0
            %2514 = vmatpush.bf16.msra.mxu0 %v2409
            %2515 = vmatpush.bf16.msra.mxu0 %v2407
            %2516 = vmatpush.bf16.msra.mxu0 %v2405
            %2517 = vmatpush.bf16.msra.mxu0 %v2403
            %2518 = vmatpush.bf16.msra.mxu0 %v2401
            %2519 = vmatpush.bf16.msra.mxu0 %v2399
            %2520 = vmatpush.bf16.msra.mxu0 %v2397
            %2521 = vmatpush.bf16.msra.mxu0 %v2395
            %2522 = vmatmul.bf16.gmra.mxu0 %v2084
            %v2523 = vpop.f32.mrf.mxu0
            %v2524 = vadd.f32 %v2511, %v2523
            %v2525 = vpop.f32.mrf.mxu0
            %2526 = vdwg.mxu0
            %2527 = vmatpush.bf16.msra.mxu0 %v2362
            %2528 = vmatpush.bf16.msra.mxu0 %v2360
            %2529 = vmatpush.bf16.msra.mxu0 %v2358
            %2530 = vmatpush.bf16.msra.mxu0 %v2356
            %2531 = vmatpush.bf16.msra.mxu0 %v2354
            %2532 = vmatpush.bf16.msra.mxu0 %v2352
            %2533 = vmatpush.bf16.msra.mxu0 %v2350
            %2534 = vmatpush.bf16.msra.mxu0 %v2348
            %2535 = vmatmul.bf16.gmra.mxu0 %v2081
            %v2536 = vpop.f32.mrf.mxu0
            %v2537 = vadd.f32 %v2152, %v2536
            %v2538 = vpop.f32.mrf.mxu0
            %2539 = vdwg.mxu0
            %2540 = vmatpush.bf16.msra.mxu0 %v2378
            %2541 = vmatpush.bf16.msra.mxu0 %v2376
            %2542 = vmatpush.bf16.msra.mxu0 %v2374
            %2543 = vmatpush.bf16.msra.mxu0 %v2372
            %2544 = vmatpush.bf16.msra.mxu0 %v2370
            %2545 = vmatpush.bf16.msra.mxu0 %v2368
            %2546 = vmatpush.bf16.msra.mxu0 %v2366
            %2547 = vmatpush.bf16.msra.mxu0 %v2364
            %2548 = vmatmul.bf16.gmra.mxu0 %v2082
            %v2549 = vpop.f32.mrf.mxu0
            %v2550 = vadd.f32 %v2537, %v2549
            %v2551 = vpop.f32.mrf.mxu0
            %2552 = vdwg.mxu0
            %2553 = vmatpush.bf16.msra.mxu0 %v2394
            %2554 = vmatpush.bf16.msra.mxu0 %v2392
            %2555 = vmatpush.bf16.msra.mxu0 %v2390
            %2556 = vmatpush.bf16.msra.mxu0 %v2388
            %2557 = vmatpush.bf16.msra.mxu0 %v2386
            %2558 = vmatpush.bf16.msra.mxu0 %v2384
            %2559 = vmatpush.bf16.msra.mxu0 %v2382
            %2560 = vmatpush.bf16.msra.mxu0 %v2380
            %2561 = vmatmul.bf16.gmra.mxu0 %v2083
            %v2562 = vpop.f32.mrf.mxu0
            %v2563 = vadd.f32 %v2550, %v2562
            %v2564 = vpop.f32.mrf.mxu0
            %2565 = vdwg.mxu0
            %2566 = vmatpush.bf16.msra.mxu0 %v2410
            %2567 = vmatpush.bf16.msra.mxu0 %v2408
            %2568 = vmatpush.bf16.msra.mxu0 %v2406
            %2569 = vmatpush.bf16.msra.mxu0 %v2404
            %2570 = vmatpush.bf16.msra.mxu0 %v2402
            %2571 = vmatpush.bf16.msra.mxu0 %v2400
            %2572 = vmatpush.bf16.msra.mxu0 %v2398
            %2573 = vmatpush.bf16.msra.mxu0 %v2396
            %2574 = vmatmul.bf16.gmra.mxu0 %v2084
            %v2575 = vpop.f32.mrf.mxu0
            %v2576 = vadd.f32 %v2563, %v2575
            %v2577 = vpop.f32.mrf.mxu0
            %2578 = vdwg.mxu0
            %v2579 = vmul.f32 %v2524, 0.1
            %v2580 = vmul.f32 %v2576, 0.1
            %v2581 = vmax.f32 %v2524, %v2579
            %v2582 = vmax.f32 %v2576, %v2580
            %v2583 = vpack.c.bf16 %v2079, %v2079
            %v2584 = vpack.c.bf16 %v2080, %v2080
            %v2585 = vpack.c.bf16 %v2581, %v2581
            %v2586 = vpack.c.bf16 %v2582, %v2582
            %v2587 = vld [vmem:[#allocation22] sm:$0xf]
            %v2588 = vld [vmem:[#allocation22 + $0x4] sm:$0xf]
            %v2589 = vld [vmem:[#allocation22 + $0x8] sm:$0xf]
            %v2590 = vld [vmem:[#allocation22 + $0xc] sm:$0xf]
            %v2591 = vld [vmem:[#allocation22 + $0x10] sm:$0xf]
            %v2592 = vld [vmem:[#allocation22 + $0x14] sm:$0xf]
            %v2593 = vld [vmem:[#allocation22 + $0x18] sm:$0xf]
            %v2594 = vld [vmem:[#allocation22 + $0x1c] sm:$0xf]
            %v2595 = vld [vmem:[#allocation22 + $0x20] sm:$0xf]
            %v2596 = vld [vmem:[#allocation22 + $0x24] sm:$0xf]
            %v2597 = vld [vmem:[#allocation22 + $0x28] sm:$0xf]
            %v2598 = vld [vmem:[#allocation22 + $0x2c] sm:$0xf]
            %v2599 = vld [vmem:[#allocation22 + $0x30] sm:$0xf]
            %v2600 = vld [vmem:[#allocation22 + $0x34] sm:$0xf]
            %v2601 = vld [vmem:[#allocation22 + $0x38] sm:$0xf]
            %v2602 = vld [vmem:[#allocation22 + $0x3c] sm:$0xf]
            %v2603 = vld [vmem:[#allocation22 + $0x40] sm:$0xf]
            %v2604 = vld [vmem:[#allocation22 + $0x44] sm:$0xf]
            %v2605 = vld [vmem:[#allocation22 + $0x48] sm:$0xf]
            %v2606 = vld [vmem:[#allocation22 + $0x4c] sm:$0xf]
            %v2607 = vld [vmem:[#allocation22 + $0x50] sm:$0xf]
            %v2608 = vld [vmem:[#allocation22 + $0x54] sm:$0xf]
            %v2609 = vld [vmem:[#allocation22 + $0x58] sm:$0xf]
            %v2610 = vld [vmem:[#allocation22 + $0x5c] sm:$0xf]
            %v2611 = vld [vmem:[#allocation22 + $0x60] sm:$0xf]
            %v2612 = vld [vmem:[#allocation22 + $0x64] sm:$0xf]
            %v2613 = vld [vmem:[#allocation22 + $0x68] sm:$0xf]
            %v2614 = vld [vmem:[#allocation22 + $0x6c] sm:$0xf]
            %v2615 = vld [vmem:[#allocation22 + $0x70] sm:$0xf]
            %v2616 = vld [vmem:[#allocation22 + $0x74] sm:$0xf]
            %v2617 = vld [vmem:[#allocation22 + $0x78] sm:$0xf]
            %v2618 = vld [vmem:[#allocation22 + $0x7c] sm:$0xf]
            %v2619 = vld [vmem:[#allocation22 + $0x80] sm:$0xf]
            %v2620 = vld [vmem:[#allocation22 + $0x84] sm:$0xf]
            %v2621 = vld [vmem:[#allocation22 + $0x88] sm:$0xf]
            %v2622 = vld [vmem:[#allocation22 + $0x8c] sm:$0xf]
            %v2623 = vld [vmem:[#allocation22 + $0x90] sm:$0xf]
            %v2624 = vld [vmem:[#allocation22 + $0x94] sm:$0xf]
            %v2625 = vld [vmem:[#allocation22 + $0x98] sm:$0xf]
            %v2626 = vld [vmem:[#allocation22 + $0x9c] sm:$0xf]
            %v2627 = vld [vmem:[#allocation22 + $0xa0] sm:$0xf]
            %v2628 = vld [vmem:[#allocation22 + $0xa4] sm:$0xf]
            %v2629 = vld [vmem:[#allocation22 + $0xa8] sm:$0xf]
            %v2630 = vld [vmem:[#allocation22 + $0xac] sm:$0xf]
            %v2631 = vld [vmem:[#allocation22 + $0xb0] sm:$0xf]
            %v2632 = vld [vmem:[#allocation22 + $0xb4] sm:$0xf]
            %v2633 = vld [vmem:[#allocation22 + $0xb8] sm:$0xf]
            %v2634 = vld [vmem:[#allocation22 + $0xbc] sm:$0xf]
            %v2635 = vld [vmem:[#allocation22 + $0xc0] sm:$0xf]
            %v2636 = vld [vmem:[#allocation22 + $0xc4] sm:$0xf]
            %v2637 = vld [vmem:[#allocation22 + $0xc8] sm:$0xf]
            %v2638 = vld [vmem:[#allocation22 + $0xcc] sm:$0xf]
            %v2639 = vld [vmem:[#allocation22 + $0xd0] sm:$0xf]
            %v2640 = vld [vmem:[#allocation22 + $0xd4] sm:$0xf]
            %v2641 = vld [vmem:[#allocation22 + $0xd8] sm:$0xf]
            %v2642 = vld [vmem:[#allocation22 + $0xdc] sm:$0xf]
            %v2643 = vld [vmem:[#allocation22 + $0xe0] sm:$0xf]
            %v2644 = vld [vmem:[#allocation22 + $0xe4] sm:$0xf]
            %v2645 = vld [vmem:[#allocation22 + $0xe8] sm:$0xf]
            %v2646 = vld [vmem:[#allocation22 + $0xec] sm:$0xf]
            %v2647 = vld [vmem:[#allocation22 + $0xf0] sm:$0xf]
            %v2648 = vld [vmem:[#allocation22 + $0xf4] sm:$0xf]
            %v2649 = vld [vmem:[#allocation22 + $0xf8] sm:$0xf]
            %v2650 = vld [vmem:[#allocation22 + $0xfc] sm:$0xf]
            %v2651 = vld [vmem:[#allocation24] sm:$0x1]
            %v2653 = vperm.slane %v2651, 0
            %v2719 = vunpack.c.l.b16 %v2587
            %v2720 = vunpack.c.l.b16 %v2588
            %v2721 = vunpack.c.l.b16 %v2589
            %v2722 = vunpack.c.l.b16 %v2590
            %v2723 = vunpack.c.l.b16 %v2591
            %v2724 = vunpack.c.l.b16 %v2592
            %v2725 = vunpack.c.l.b16 %v2593
            %v2726 = vunpack.c.l.b16 %v2594
            %v2727 = vunpack.c.l.b16 %v2595
            %v2728 = vunpack.c.l.b16 %v2596
            %v2729 = vunpack.c.l.b16 %v2597
            %v2730 = vunpack.c.l.b16 %v2598
            %v2731 = vunpack.c.l.b16 %v2599
            %v2732 = vunpack.c.l.b16 %v2600
            %v2733 = vunpack.c.l.b16 %v2601
            %v2734 = vunpack.c.l.b16 %v2602
            %v2735 = vunpack.c.l.b16 %v2603
            %v2736 = vunpack.c.l.b16 %v2604
            %v2737 = vunpack.c.l.b16 %v2605
            %v2738 = vunpack.c.l.b16 %v2606
            %v2739 = vunpack.c.l.b16 %v2607
            %v2740 = vunpack.c.l.b16 %v2608
            %v2741 = vunpack.c.l.b16 %v2609
            %v2742 = vunpack.c.l.b16 %v2610
            %v2743 = vunpack.c.l.b16 %v2611
            %v2744 = vunpack.c.l.b16 %v2612
            %v2745 = vunpack.c.l.b16 %v2613
            %v2746 = vunpack.c.l.b16 %v2614
            %v2747 = vunpack.c.l.b16 %v2615
            %v2748 = vunpack.c.l.b16 %v2616
            %v2749 = vunpack.c.l.b16 %v2617
            %v2750 = vunpack.c.l.b16 %v2618
            %v2751 = vunpack.c.l.b16 %v2619
            %v2752 = vunpack.c.l.b16 %v2620
            %v2753 = vunpack.c.l.b16 %v2621
            %v2754 = vunpack.c.l.b16 %v2622
            %v2755 = vunpack.c.l.b16 %v2623
            %v2756 = vunpack.c.l.b16 %v2624
            %v2757 = vunpack.c.l.b16 %v2625
            %v2758 = vunpack.c.l.b16 %v2626
            %v2759 = vunpack.c.l.b16 %v2627
            %v2760 = vunpack.c.l.b16 %v2628
            %v2761 = vunpack.c.l.b16 %v2629
            %v2762 = vunpack.c.l.b16 %v2630
            %v2763 = vunpack.c.l.b16 %v2631
            %v2764 = vunpack.c.l.b16 %v2632
            %v2765 = vunpack.c.l.b16 %v2633
            %v2766 = vunpack.c.l.b16 %v2634
            %v2767 = vunpack.c.l.b16 %v2635
            %v2768 = vunpack.c.l.b16 %v2636
            %v2769 = vunpack.c.l.b16 %v2637
            %v2770 = vunpack.c.l.b16 %v2638
            %v2771 = vunpack.c.l.b16 %v2639
            %v2772 = vunpack.c.l.b16 %v2640
            %v2773 = vunpack.c.l.b16 %v2641
            %v2774 = vunpack.c.l.b16 %v2642
            %v2775 = vunpack.c.l.b16 %v2643
            %v2776 = vunpack.c.l.b16 %v2644
            %v2777 = vunpack.c.l.b16 %v2645
            %v2778 = vunpack.c.l.b16 %v2646
            %v2779 = vunpack.c.l.b16 %v2647
            %v2780 = vunpack.c.l.b16 %v2648
            %v2781 = vunpack.c.l.b16 %v2649
            %v2782 = vunpack.c.l.b16 %v2650
            %v2783 = vpack.c.b16 %v2720, %v2719
            %v2784 = vpack.c.b16 %v2722, %v2721
            %v2785 = vpack.c.b16 %v2724, %v2723
            %v2786 = vpack.c.b16 %v2726, %v2725
            %v2787 = vpack.c.b16 %v2728, %v2727
            %v2788 = vpack.c.b16 %v2730, %v2729
            %v2789 = vpack.c.b16 %v2732, %v2731
            %v2790 = vpack.c.b16 %v2734, %v2733
            %v2791 = vpack.c.b16 %v2736, %v2735
            %v2792 = vpack.c.b16 %v2738, %v2737
            %v2793 = vpack.c.b16 %v2740, %v2739
            %v2794 = vpack.c.b16 %v2742, %v2741
            %v2795 = vpack.c.b16 %v2744, %v2743
            %v2796 = vpack.c.b16 %v2746, %v2745
            %v2797 = vpack.c.b16 %v2748, %v2747
            %v2798 = vpack.c.b16 %v2750, %v2749
            %v2799 = vpack.c.b16 %v2752, %v2751
            %v2800 = vpack.c.b16 %v2754, %v2753
            %v2801 = vpack.c.b16 %v2756, %v2755
            %v2802 = vpack.c.b16 %v2758, %v2757
            %v2803 = vpack.c.b16 %v2760, %v2759
            %v2804 = vpack.c.b16 %v2762, %v2761
            %v2805 = vpack.c.b16 %v2764, %v2763
            %v2806 = vpack.c.b16 %v2766, %v2765
            %v2807 = vpack.c.b16 %v2768, %v2767
            %v2808 = vpack.c.b16 %v2770, %v2769
            %v2809 = vpack.c.b16 %v2772, %v2771
            %v2810 = vpack.c.b16 %v2774, %v2773
            %v2811 = vpack.c.b16 %v2776, %v2775
            %v2812 = vpack.c.b16 %v2778, %v2777
            %v2813 = vpack.c.b16 %v2780, %v2779
            %v2814 = vpack.c.b16 %v2782, %v2781
            %2847 = vmatpush.bf16.msra.mxu0 %v2790
            %2848 = vmatpush.bf16.msra.mxu0 %v2789
            %2849 = vmatpush.bf16.msra.mxu0 %v2788
            %2850 = vmatpush.bf16.msra.mxu0 %v2787
            %2851 = vmatpush.bf16.msra.mxu0 %v2786
            %2852 = vmatpush.bf16.msra.mxu0 %v2785
            %2853 = vmatpush.bf16.msra.mxu0 %v2784
            %2854 = vmatpush.bf16.msra.mxu0 %v2783
            %2855 = vmatmul.bf16.gmra.mxu0 %v2583
            %v2856 = vpop.f32.mrf.mxu0
            %v2857 = vadd.f32 %v2653, %v2856
            %v2858 = vpop.f32.mrf.mxu0
            %2859 = vdwg.mxu0
            %2860 = vmatpush.bf16.msra.mxu0 %v2798
            %2861 = vmatpush.bf16.msra.mxu0 %v2797
            %2862 = vmatpush.bf16.msra.mxu0 %v2796
            %2863 = vmatpush.bf16.msra.mxu0 %v2795
            %2864 = vmatpush.bf16.msra.mxu0 %v2794
            %2865 = vmatpush.bf16.msra.mxu0 %v2793
            %2866 = vmatpush.bf16.msra.mxu0 %v2792
            %2867 = vmatpush.bf16.msra.mxu0 %v2791
            %2868 = vmatmul.bf16.gmra.mxu0 %v2584
            %v2869 = vpop.f32.mrf.mxu0
            %v2870 = vadd.f32 %v2857, %v2869
            %v2871 = vpop.f32.mrf.mxu0
            %2872 = vdwg.mxu0
            %2873 = vmatpush.bf16.msra.mxu0 %v2806
            %2874 = vmatpush.bf16.msra.mxu0 %v2805
            %2875 = vmatpush.bf16.msra.mxu0 %v2804
            %2876 = vmatpush.bf16.msra.mxu0 %v2803
            %2877 = vmatpush.bf16.msra.mxu0 %v2802
            %2878 = vmatpush.bf16.msra.mxu0 %v2801
            %2879 = vmatpush.bf16.msra.mxu0 %v2800
            %2880 = vmatpush.bf16.msra.mxu0 %v2799
            %2881 = vmatmul.bf16.gmra.mxu0 %v2585
            %v2882 = vpop.f32.mrf.mxu0
            %v2883 = vadd.f32 %v2870, %v2882
            %v2884 = vpop.f32.mrf.mxu0
            %2885 = vdwg.mxu0
            %2886 = vmatpush.bf16.msra.mxu0 %v2814
            %2887 = vmatpush.bf16.msra.mxu0 %v2813
            %2888 = vmatpush.bf16.msra.mxu0 %v2812
            %2889 = vmatpush.bf16.msra.mxu0 %v2811
            %2890 = vmatpush.bf16.msra.mxu0 %v2810
            %2891 = vmatpush.bf16.msra.mxu0 %v2809
            %2892 = vmatpush.bf16.msra.mxu0 %v2808
            %2893 = vmatpush.bf16.msra.mxu0 %v2807
            %2894 = vmatmul.bf16.gmra.mxu0 %v2586
            %v2895 = vpop.f32.mrf.mxu0
            %v2896 = vadd.f32 %v2883, %v2895
            %v2897 = vpop.f32.mrf.mxu0
            %2898 = vdwg.mxu0
            %2899 = vst [vmem:[#allocation25] sm:$0xff] %v2896
          $region160: #{tpu_custom_call.1} parent=147 // pred_fallthru
            _
        $region148: #{tpu_custom_call.1} parent=79 // pred_fallthru
          _
        // Predicated region
        $region161: #{tpu_custom_call.1} parent=79 // pred_check
          %p2900 = pneg %p399
        $region162: #{tpu_custom_call.1} parent=79 // pred_check_branch
          %2902 = sbr.rel (%p2900) target = $region164
        $region163: #{tpu_custom_call.1} parent=79 // pred_region
          %2904 = vsyncadd [#allocation6], 0
          %s2905 = smul.addr %s38, 8
          %s2906 = scalar_lea.hbm %s15, %s2905
          %s2908 = sshll.u32 [#allocation25], 4
          %s2909 = int_to_ptr.vmem [resolvable:$true] %s2908
          %s2910 = sshll.u32 %s2906, 4
          %s2911 = int_to_ptr.hbm [resolvable:$true] %s2910
          %2913 = dma.vmem_to_hbm [thread:$0]  %s2909, 128, %s2911, [#allocation6]
        $region164: #{tpu_custom_call.1} parent=79 // pred_fallthru
          _
        // Predicated region
        $region165: #{tpu_custom_call.1} parent=79 // pred_check
          %p2914 = pneg %p399
        $region166: #{tpu_custom_call.1} parent=79 // pred_check_branch
          %2916 = sbr.rel (%p2914) target = $region168
        $region167: #{tpu_custom_call.1} parent=79 // pred_region
          %2918 = dma.done [#allocation6], 128
        $region168: #{tpu_custom_call.1} parent=79 // pred_fallthru
          _
      $region80: #{tpu_custom_call.1} parent=5 // pred_fallthru
        _
      %p2919 = scmp.le.s32.totalorder 2, %s28
      // Predicated region
      $region169: #{tpu_custom_call.1} parent=5 // pred_check
        %p2920 = pneg %p2919
      $region170: #{tpu_custom_call.1} parent=5 // pred_check_branch
        %2922 = sbr.rel (%p2920) target = $region172
      $region171: #{tpu_custom_call.1} parent=5 // pred_region
        %s2923 = ssub.s32 %s28, 2
      $region172: #{tpu_custom_call.1} parent=5 // pred_fallthru
        _
    $region6: #{tpu_custom_call.1} parent=1 // loop_footer
      %s32 = sadd.s32 1, %s28
    $region7: #{tpu_custom_call.1} parent=1 // loop_footer_branch
      %27 = sbr.rel target = $region3
    $region8: #{tpu_custom_call.1} parent=1 // loop_exit
      _
    %2924 = vsyncpa [#allocation5], 1
    %s2925 = scalar_lea.sflag [#allocation5], 1
    %2926 = vsyncpa %s2925, 1
    %2927 = vsyncpa [#allocation8], 1
    %2928 = vsyncpa [#allocation11], 1
    %2929 = vsyncpa [#allocation14], 1
    %2930 = vsyncpa [#allocation20], 1
    %2931 = vsyncpa [#allocation23], 1
    %2932 = vsyncpa [#allocation6], 1
    %s2933 = scalar_lea.sflag [#allocation6], 1
    %2934 = vsyncpa %s2933, 1

</llo_original>
